<compile_context>
chip_gen: v7x
topology: tpu7x:2x2x1
jax: 0.10.0
libtpu: 0.0.40
codegen_flags: <defaults>
</compile_context>

<pallas_src>
import jax
import jax.numpy as jnp
from jax.experimental import pallas as pl
from jax.experimental.pallas import tpu as pltpu

EMB = 100   # embedding_size
HID = 32    # hidden_size


def rnn_kernel(xg_ref,   # (T, Bp, 4H) f32  precomputed layer-0 input gates (+b0)
               w_ref,    # (8H, 4H)   bf16  packed [whh0; wih1; whh1; fc1w_pad; fc2w_pad]
               b_ref,    # (8, 4H)    f32   packed [b1; fc1b_pad; fc2b_bcast; 0...]
               out_ref): # (Bp, 4H)   f32   lane-dense output (col 0 is fc2 result)
    T, Bp, G = xg_ref.shape
    H = HID
    bf16 = jnp.bfloat16

    # ---- Hoisted weight / bias slices (one-time, outside the recurrence). ----
    whh0 = w_ref[0 * H:1 * H, :]          # (H, 4H) bf16
    wih1 = w_ref[1 * H:2 * H, :]          # (H, 4H) bf16
    whh1 = w_ref[2 * H:3 * H, :]          # (H, 4H) bf16
    fc1w = w_ref[3 * H:4 * H, :]          # (H, 4H) bf16, lanes >= H are zero
    fc2w = w_ref[4 * H:4 * H + G, :]      # (4H, 4H) bf16, only [0:H, 0] nonzero

    b1   = jnp.broadcast_to(b_ref[0:1, :], (Bp, G))   # hoisted broadcast
    fc1b = b_ref[1:2, :]                               # (1, 4H)
    fc2b = b_ref[2:3, :]                               # (1, 4H) scalar bcast

    def gates_to_hc(gates, c_prev):
        # Exact sigmoid via tanh: sigma(x) = 0.5*(tanh(x/2)+1)  (EUP-friendly).
        sg = 0.5 * (jnp.tanh(0.5 * gates) + 1.0)
        tg = jnp.tanh(gates)
        i = sg[:, 0:H]
        f = sg[:, H:2 * H]
        g = tg[:, 2 * H:3 * H]
        o = sg[:, 3 * H:4 * H]
        c_new = f * c_prev + i * g
        h_new = o * jnp.tanh(c_new)
        return h_new, c_new

    def step(xg_t, h1, c1, h2, c2):
        # Layer 0: input projection precomputed; only h->h matmul on the chain.
        g1 = xg_t + jnp.dot(h1.astype(bf16), whh0,
                            preferred_element_type=jnp.float32)
        h1, c1 = gates_to_hc(g1, c1)
        # Layer 1: two independent K=32 bf16 matmuls (no lane concat).
        g2 = (jnp.dot(h1.astype(bf16), wih1,
                      preferred_element_type=jnp.float32)
              + jnp.dot(h2.astype(bf16), whh1,
                        preferred_element_type=jnp.float32)
              + b1)
        h2, c2 = gates_to_hc(g2, c2)
        return h1, c1, h2, c2

    z = jnp.zeros((Bp, H), jnp.float32)
    h1 = c1 = h2 = c2 = z

    if T <= 16:
        # Keep input gates in vregs; static slicing, fully unrolled.
        xg_all = xg_ref[...]                       # (T, Bp, 4H)
        for t in range(T):
            h1, c1, h2, c2 = step(xg_all[t], h1, c1, h2, c2)
    else:
        # TODO(synk): for long T, skew the loop (layer-1 of step t alongside
        # layer-0 of step t+1) and/or tile xg over time chunks for VMEM.
        def body(t, carry):
            h1, c1, h2, c2 = carry
            return step(xg_ref[t], h1, c1, h2, c2)
        h1, c1, h2, c2 = jax.lax.fori_loop(0, T, body, (h1, c1, h2, c2),
                                           unroll=2)

    # ---- FC head on the last timestep's layer-2 hidden state (lane-dense). --
    f1 = jnp.dot(h2.astype(bf16), fc1w,
                 preferred_element_type=jnp.float32) + fc1b
    f1 = jnp.maximum(f1, 0.0)                      # lanes >= H are exactly 0
    out = jnp.dot(f1.astype(bf16), fc2w,
                  preferred_element_type=jnp.float32) + fc2b
    out_ref[...] = out                              # unmasked (Bp, 128) store


def rnn_forward(sentence, params):
    """sentence: (B, T) int32 token ids."""
    B, T = sentence.shape
    H = HID
    G = 4 * H
    Bp = max(8, ((B + 7) // 8) * 8)     # pad batch to f32 sublane multiple

    # --- Fold W_ih_l0 + combined layer-0 bias into the embedding table. ------
    # TODO(synk): embedding gather stays in plain JAX (data-dependent row
    # gather; not worth a Pallas DMA-gather at this size).
    b0 = params["b_ih_l0"] + params["b_hh_l0"]
    emb_gates = (params["embedding"].astype(jnp.float32)
                 @ params["w_ih_l0"].T.astype(jnp.float32) + b0)    # (V, 4H)
    xg = jnp.take(emb_gates, sentence, axis=0)                      # (B, T, 4H)
    xg = jnp.transpose(xg, (1, 0, 2)).astype(jnp.float32)           # (T, B, 4H)
    xg = jnp.pad(xg, ((0, 0), (0, Bp - B), (0, 0)))                 # (T, Bp, 4H)

    # --- Pack all weights into one bf16 slab, all biases into one f32 slab. --
    whh0 = params["w_hh_l0"].T                                      # (H, 4H)
    wih1 = params["w_ih_l1"].T                                      # (H, 4H)
    whh1 = params["w_hh_l1"].T                                      # (H, 4H)
    fc1w = jnp.pad(params["fc1_w"].T, ((0, 0), (0, G - H)))         # (H, 4H)
    fc2w = jnp.pad(params["fc2_w"].T, ((0, G - H), (0, G - 1)))     # (4H, 4H)
    wslab = jnp.concatenate([whh0, wih1, whh1, fc1w, fc2w],
                            axis=0).astype(jnp.bfloat16)            # (8H, 4H)

    b1 = (params["b_ih_l1"] + params["b_hh_l1"]).reshape(1, G)      # (1, 4H)
    fc1b = jnp.pad(params["fc1_b"].reshape(1, H), ((0, 0), (0, G - H)))
    fc2b = jnp.broadcast_to(params["fc2_b"].reshape(1, 1), (1, G))
    bslab = jnp.concatenate(
        [b1, fc1b, fc2b, jnp.zeros((5, G), jnp.float32)], axis=0)   # (8, 4H)

    vmem = lambda: pl.BlockSpec(memory_space=pltpu.MemorySpace.VMEM)
    # TODO(synk): for large B on v7x, add a batch-tile grid axis with
    # dimension_semantics=("parallel",) to use both TensorCores.
    out = pl.pallas_call(
        rnn_kernel,
        out_shape=jax.ShapeDtypeStruct((Bp, G), jnp.float32),
        in_specs=[vmem(), vmem(), vmem()],
        out_specs=vmem(),
    )(xg, wslab, bslab)
    return out[:B, :1]


def rnn_reference(sentence, params):
    """Pure-JAX reference mirroring the PyTorch forward (eval mode, f32)."""
    B = sentence.shape[0]
    x = jnp.take(params["embedding"], sentence, axis=0)
    x = jnp.transpose(x, (1, 0, 2)).astype(jnp.float32)             # (T, B, E)

    def layer(x_seq, wih, whh, bih, bhh):
        def step(carry, xt):
            h, c = carry
            gates = xt @ wih.T + bih + h @ whh.T + bhh
            i, f, g, o = jnp.split(gates, 4, axis=-1)
            i, f, o = jax.nn.sigmoid(i), jax.nn.sigmoid(f), jax.nn.sigmoid(o)
            g = jnp.tanh(g)
            c = f * c + i * g
            h = o * jnp.tanh(c)
            return (h, c), h

        h0 = jnp.zeros((B, HID), jnp.float32)
        _, hs = jax.lax.scan(step, (h0, h0), x_seq)
        return hs

    h1 = layer(x, params["w_ih_l0"], params["w_hh_l0"],
               params["b_ih_l0"], params["b_hh_l0"])
    h2 = layer(h1, params["w_ih_l1"], params["w_hh_l1"],
               params["b_ih_l1"], params["b_hh_l1"])
    last = h2[-1]
    f1 = jnp.maximum(last @ params["fc1_w"].T + params["fc1_b"], 0.0)
    return f1 @ params["fc2_w"].T + params["fc2_b"]


def init_params(n_vocab, key):
    ks = jax.random.split(key, 12)
    u = lambda k, shape, s: jax.random.uniform(k, shape, jnp.float32, -s, s)
    s = 1.0 / (HID ** 0.5)
    return {
        "embedding": jax.random.normal(ks[0], (n_vocab, EMB), jnp.float32),
        "w_ih_l0": u(ks[1], (4 * HID, EMB), s),
        "w_hh_l0": u(ks[2], (4 * HID, HID), s),
        "b_ih_l0": u(ks[3], (4 * HID,), s),
        "b_hh_l0": u(ks[4], (4 * HID,), s),
        "w_ih_l1": u(ks[5], (4 * HID, HID), s),
        "w_hh_l1": u(ks[6], (4 * HID, HID), s),
        "b_ih_l1": u(ks[7], (4 * HID,), s),
        "b_hh_l1": u(ks[8], (4 * HID,), s),
        "fc1_w": u(ks[9], (HID, HID), s),
        "fc1_b": u(ks[10], (HID,), s),
        "fc2_w": u(ks[11], (1, HID), s),
        "fc2_b": jnp.zeros((1,), jnp.float32),
    }


if __name__ == "__main__":
    key = jax.random.PRNGKey(0)
    k_param, k_sent = jax.random.split(key)

    n_vocab, batch, seq = 50, 2, 8
    params = init_params(n_vocab, k_param)
    sentence = jax.random.randint(k_sent, (batch, seq), 0, n_vocab,
                                  dtype=jnp.int32)

    out = rnn_forward(sentence, params)
    out = jax.block_until_ready(out)

    ref = rnn_reference(sentence, params)
    assert out.shape == (batch, 1)
    # bf16 matmul operands in the kernel (f32 accumulate/carry) vs. f32 ref.
    assert jnp.allclose(out, ref, rtol=2.5e-2, atol=2.5e-2), (out, ref)

    print("KERNEL_OK")
</pallas_src>

<mosaic_0001>
module attributes {stable_mosaic.version = 11 : i64} {
  func.func @rnn_kernel(%arg0: memref<8x8x128xf32, #tpu.memory_space<vmem>>, %arg1: memref<256x128xbf16, #tpu.memory_space<vmem>>, %arg2: memref<8x128xf32, #tpu.memory_space<vmem>>, %arg3: memref<8x128xf32, #tpu.memory_space<vmem>>) attributes {dimension_semantics = [], scalar_prefetch = 0 : i64, scratch_operands = 0 : i64, tpu.core_type = #tpu.core_type<tc>} {
    %c0 = arith.constant 0 : index
    %c0_0 = arith.constant 0 : index
    %0 = vector.load %arg1[%c0, %c0_0] : memref<256x128xbf16, #tpu.memory_space<vmem>>, vector<32x128xbf16>
    %c32 = arith.constant 32 : index
    %c0_1 = arith.constant 0 : index
    %1 = vector.load %arg1[%c32, %c0_1] : memref<256x128xbf16, #tpu.memory_space<vmem>>, vector<32x128xbf16>
    %c64 = arith.constant 64 : index
    %c0_2 = arith.constant 0 : index
    %2 = vector.load %arg1[%c64, %c0_2] : memref<256x128xbf16, #tpu.memory_space<vmem>>, vector<32x128xbf16>
    %c96 = arith.constant 96 : index
    %c0_3 = arith.constant 0 : index
    %3 = vector.load %arg1[%c96, %c0_3] : memref<256x128xbf16, #tpu.memory_space<vmem>>, vector<32x128xbf16>
    %c128 = arith.constant 128 : index
    %c0_4 = arith.constant 0 : index
    %4 = vector.load %arg1[%c128, %c0_4] : memref<256x128xbf16, #tpu.memory_space<vmem>>, vector<128x128xbf16>
    %c0_5 = arith.constant 0 : index
    %c0_6 = arith.constant 0 : index
    %5 = vector.load %arg2[%c0_5, %c0_6] : memref<8x128xf32, #tpu.memory_space<vmem>>, vector<1x128xf32>
    %6 = vector.shape_cast %5 : vector<1x128xf32> to vector<1x128xf32>
    %7 = vector.broadcast %6 : vector<1x128xf32> to vector<8x128xf32>
    %c1 = arith.constant 1 : index
    %c0_7 = arith.constant 0 : index
    %8 = vector.load %arg2[%c1, %c0_7] : memref<8x128xf32, #tpu.memory_space<vmem>>, vector<1x128xf32>
    %c2 = arith.constant 2 : index
    %c0_8 = arith.constant 0 : index
    %9 = vector.load %arg2[%c2, %c0_8] : memref<8x128xf32, #tpu.memory_space<vmem>>, vector<1x128xf32>
    %cst = arith.constant 0.000000e+00 : f32
    %10 = vector.broadcast %cst : f32 to vector<8x32xf32>
    %c0_9 = arith.constant 0 : index
    %c0_10 = arith.constant 0 : index
    %c0_11 = arith.constant 0 : index
    %11 = vector.load %arg0[%c0_9, %c0_10, %c0_11] : memref<8x8x128xf32, #tpu.memory_space<vmem>>, vector<8x8x128xf32>
    %12 = vector.extract_strided_slice %11 {offsets = [0, 0, 0], sizes = [1, 8, 128], strides = [1, 1, 1]} : vector<8x8x128xf32> to vector<1x8x128xf32>
    %13 = vector.shape_cast %12 : vector<1x8x128xf32> to vector<8x128xf32>
    %14 = arith.truncf %10 : vector<8x32xf32> to vector<8x32xbf16>
    %cst_12 = arith.constant dense<0.000000e+00> : vector<8x128xf32>
    %15 = tpu.matmul %14, %0, %cst_12 {dimension_numbers = #tpu.dot_dimension_numbers<[1], [0], [0], [1], [0, 0, 1, 1], [], []>} : vector<8x32xbf16>, vector<32x128xbf16>, vector<8x128xf32> -> vector<8x128xf32>
    %16 = arith.addf %13, %15 : vector<8x128xf32>
    %cst_13 = arith.constant 5.000000e-01 : f32
    %17 = vector.broadcast %cst_13 : f32 to vector<8x128xf32>
    %18 = arith.mulf %17, %16 : vector<8x128xf32>
    %19 = math.tanh %18 : vector<8x128xf32>
    %cst_14 = arith.constant 1.000000e+00 : f32
    %20 = vector.broadcast %cst_14 : f32 to vector<8x128xf32>
    %21 = arith.addf %19, %20 : vector<8x128xf32>
    %cst_15 = arith.constant 5.000000e-01 : f32
    %22 = vector.broadcast %cst_15 : f32 to vector<8x128xf32>
    %23 = arith.mulf %22, %21 : vector<8x128xf32>
    %24 = math.tanh %16 : vector<8x128xf32>
    %25 = vector.extract_strided_slice %23 {offsets = [0, 0], sizes = [8, 32], strides = [1, 1]} : vector<8x128xf32> to vector<8x32xf32>
    %26 = vector.extract_strided_slice %23 {offsets = [0, 32], sizes = [8, 32], strides = [1, 1]} : vector<8x128xf32> to vector<8x32xf32>
    %27 = vector.extract_strided_slice %24 {offsets = [0, 64], sizes = [8, 32], strides = [1, 1]} : vector<8x128xf32> to vector<8x32xf32>
    %28 = vector.extract_strided_slice %23 {offsets = [0, 96], sizes = [8, 32], strides = [1, 1]} : vector<8x128xf32> to vector<8x32xf32>
    %29 = arith.mulf %26, %10 : vector<8x32xf32>
    %30 = arith.mulf %25, %27 : vector<8x32xf32>
    %31 = arith.addf %29, %30 : vector<8x32xf32>
    %32 = math.tanh %31 : vector<8x32xf32>
    %33 = arith.mulf %28, %32 : vector<8x32xf32>
    %34 = arith.truncf %33 : vector<8x32xf32> to vector<8x32xbf16>
    %cst_16 = arith.constant dense<0.000000e+00> : vector<8x128xf32>
    %35 = tpu.matmul %34, %1, %cst_16 {dimension_numbers = #tpu.dot_dimension_numbers<[1], [0], [0], [1], [0, 0, 1, 1], [], []>} : vector<8x32xbf16>, vector<32x128xbf16>, vector<8x128xf32> -> vector<8x128xf32>
    %36 = arith.truncf %10 : vector<8x32xf32> to vector<8x32xbf16>
    %cst_17 = arith.constant dense<0.000000e+00> : vector<8x128xf32>
    %37 = tpu.matmul %36, %2, %cst_17 {dimension_numbers = #tpu.dot_dimension_numbers<[1], [0], [0], [1], [0, 0, 1, 1], [], []>} : vector<8x32xbf16>, vector<32x128xbf16>, vector<8x128xf32> -> vector<8x128xf32>
    %38 = arith.addf %35, %37 : vector<8x128xf32>
    %39 = arith.addf %38, %7 : vector<8x128xf32>
    %cst_18 = arith.constant 5.000000e-01 : f32
    %40 = vector.broadcast %cst_18 : f32 to vector<8x128xf32>
    %41 = arith.mulf %40, %39 : vector<8x128xf32>
    %42 = math.tanh %41 : vector<8x128xf32>
    %cst_19 = arith.constant 1.000000e+00 : f32
    %43 = vector.broadcast %cst_19 : f32 to vector<8x128xf32>
    %44 = arith.addf %42, %43 : vector<8x128xf32>
    %cst_20 = arith.constant 5.000000e-01 : f32
    %45 = vector.broadcast %cst_20 : f32 to vector<8x128xf32>
    %46 = arith.mulf %45, %44 : vector<8x128xf32>
    %47 = math.tanh %39 : vector<8x128xf32>
    %48 = vector.extract_strided_slice %46 {offsets = [0, 0], sizes = [8, 32], strides = [1, 1]} : vector<8x128xf32> to vector<8x32xf32>
    %49 = vector.extract_strided_slice %46 {offsets = [0, 32], sizes = [8, 32], strides = [1, 1]} : vector<8x128xf32> to vector<8x32xf32>
    %50 = vector.extract_strided_slice %47 {offsets = [0, 64], sizes = [8, 32], strides = [1, 1]} : vector<8x128xf32> to vector<8x32xf32>
    %51 = vector.extract_strided_slice %46 {offsets = [0, 96], sizes = [8, 32], strides = [1, 1]} : vector<8x128xf32> to vector<8x32xf32>
    %52 = arith.mulf %49, %10 : vector<8x32xf32>
    %53 = arith.mulf %48, %50 : vector<8x32xf32>
    %54 = arith.addf %52, %53 : vector<8x32xf32>
    %55 = math.tanh %54 : vector<8x32xf32>
    %56 = arith.mulf %51, %55 : vector<8x32xf32>
    %57 = vector.extract_strided_slice %11 {offsets = [1, 0, 0], sizes = [1, 8, 128], strides = [1, 1, 1]} : vector<8x8x128xf32> to vector<1x8x128xf32>
    %58 = vector.shape_cast %57 : vector<1x8x128xf32> to vector<8x128xf32>
    %59 = arith.truncf %33 : vector<8x32xf32> to vector<8x32xbf16>
    %cst_21 = arith.constant dense<0.000000e+00> : vector<8x128xf32>
    %60 = tpu.matmul %59, %0, %cst_21 {dimension_numbers = #tpu.dot_dimension_numbers<[1], [0], [0], [1], [0, 0, 1, 1], [], []>} : vector<8x32xbf16>, vector<32x128xbf16>, vector<8x128xf32> -> vector<8x128xf32>
    %61 = arith.addf %58, %60 : vector<8x128xf32>
    %cst_22 = arith.constant 5.000000e-01 : f32
    %62 = vector.broadcast %cst_22 : f32 to vector<8x128xf32>
    %63 = arith.mulf %62, %61 : vector<8x128xf32>
    %64 = math.tanh %63 : vector<8x128xf32>
    %cst_23 = arith.constant 1.000000e+00 : f32
    %65 = vector.broadcast %cst_23 : f32 to vector<8x128xf32>
    %66 = arith.addf %64, %65 : vector<8x128xf32>
    %cst_24 = arith.constant 5.000000e-01 : f32
    %67 = vector.broadcast %cst_24 : f32 to vector<8x128xf32>
    %68 = arith.mulf %67, %66 : vector<8x128xf32>
    %69 = math.tanh %61 : vector<8x128xf32>
    %70 = vector.extract_strided_slice %68 {offsets = [0, 0], sizes = [8, 32], strides = [1, 1]} : vector<8x128xf32> to vector<8x32xf32>
    %71 = vector.extract_strided_slice %68 {offsets = [0, 32], sizes = [8, 32], strides = [1, 1]} : vector<8x128xf32> to vector<8x32xf32>
    %72 = vector.extract_strided_slice %69 {offsets = [0, 64], sizes = [8, 32], strides = [1, 1]} : vector<8x128xf32> to vector<8x32xf32>
    %73 = vector.extract_strided_slice %68 {offsets = [0, 96], sizes = [8, 32], strides = [1, 1]} : vector<8x128xf32> to vector<8x32xf32>
    %74 = arith.mulf %71, %31 : vector<8x32xf32>
    %75 = arith.mulf %70, %72 : vector<8x32xf32>
    %76 = arith.addf %74, %75 : vector<8x32xf32>
    %77 = math.tanh %76 : vector<8x32xf32>
    %78 = arith.mulf %73, %77 : vector<8x32xf32>
    %79 = arith.truncf %78 : vector<8x32xf32> to vector<8x32xbf16>
    %cst_25 = arith.constant dense<0.000000e+00> : vector<8x128xf32>
    %80 = tpu.matmul %79, %1, %cst_25 {dimension_numbers = #tpu.dot_dimension_numbers<[1], [0], [0], [1], [0, 0, 1, 1], [], []>} : vector<8x32xbf16>, vector<32x128xbf16>, vector<8x128xf32> -> vector<8x128xf32>
    %81 = arith.truncf %56 : vector<8x32xf32> to vector<8x32xbf16>
    %cst_26 = arith.constant dense<0.000000e+00> : vector<8x128xf32>
    %82 = tpu.matmul %81, %2, %cst_26 {dimension_numbers = #tpu.dot_dimension_numbers<[1], [0], [0], [1], [0, 0, 1, 1], [], []>} : vector<8x32xbf16>, vector<32x128xbf16>, vector<8x128xf32> -> vector<8x128xf32>
    %83 = arith.addf %80, %82 : vector<8x128xf32>
    %84 = arith.addf %83, %7 : vector<8x128xf32>
    %cst_27 = arith.constant 5.000000e-01 : f32
    %85 = vector.broadcast %cst_27 : f32 to vector<8x128xf32>
    %86 = arith.mulf %85, %84 : vector<8x128xf32>
    %87 = math.tanh %86 : vector<8x128xf32>
    %cst_28 = arith.constant 1.000000e+00 : f32
    %88 = vector.broadcast %cst_28 : f32 to vector<8x128xf32>
    %89 = arith.addf %87, %88 : vector<8x128xf32>
    %cst_29 = arith.constant 5.000000e-01 : f32
    %90 = vector.broadcast %cst_29 : f32 to vector<8x128xf32>
    %91 = arith.mulf %90, %89 : vector<8x128xf32>
    %92 = math.tanh %84 : vector<8x128xf32>
    %93 = vector.extract_strided_slice %91 {offsets = [0, 0], sizes = [8, 32], strides = [1, 1]} : vector<8x128xf32> to vector<8x32xf32>
    %94 = vector.extract_strided_slice %91 {offsets = [0, 32], sizes = [8, 32], strides = [1, 1]} : vector<8x128xf32> to vector<8x32xf32>
    %95 = vector.extract_strided_slice %92 {offsets = [0, 64], sizes = [8, 32], strides = [1, 1]} : vector<8x128xf32> to vector<8x32xf32>
    %96 = vector.extract_strided_slice %91 {offsets = [0, 96], sizes = [8, 32], strides = [1, 1]} : vector<8x128xf32> to vector<8x32xf32>
    %97 = arith.mulf %94, %54 : vector<8x32xf32>
    %98 = arith.mulf %93, %95 : vector<8x32xf32>
    %99 = arith.addf %97, %98 : vector<8x32xf32>
    %100 = math.tanh %99 : vector<8x32xf32>
    %101 = arith.mulf %96, %100 : vector<8x32xf32>
    %102 = vector.extract_strided_slice %11 {offsets = [2, 0, 0], sizes = [1, 8, 128], strides = [1, 1, 1]} : vector<8x8x128xf32> to vector<1x8x128xf32>
    %103 = vector.shape_cast %102 : vector<1x8x128xf32> to vector<8x128xf32>
    %104 = arith.truncf %78 : vector<8x32xf32> to vector<8x32xbf16>
    %cst_30 = arith.constant dense<0.000000e+00> : vector<8x128xf32>
    %105 = tpu.matmul %104, %0, %cst_30 {dimension_numbers = #tpu.dot_dimension_numbers<[1], [0], [0], [1], [0, 0, 1, 1], [], []>} : vector<8x32xbf16>, vector<32x128xbf16>, vector<8x128xf32> -> vector<8x128xf32>
    %106 = arith.addf %103, %105 : vector<8x128xf32>
    %cst_31 = arith.constant 5.000000e-01 : f32
    %107 = vector.broadcast %cst_31 : f32 to vector<8x128xf32>
    %108 = arith.mulf %107, %106 : vector<8x128xf32>
    %109 = math.tanh %108 : vector<8x128xf32>
    %cst_32 = arith.constant 1.000000e+00 : f32
    %110 = vector.broadcast %cst_32 : f32 to vector<8x128xf32>
    %111 = arith.addf %109, %110 : vector<8x128xf32>
    %cst_33 = arith.constant 5.000000e-01 : f32
    %112 = vector.broadcast %cst_33 : f32 to vector<8x128xf32>
    %113 = arith.mulf %112, %111 : vector<8x128xf32>
    %114 = math.tanh %106 : vector<8x128xf32>
    %115 = vector.extract_strided_slice %113 {offsets = [0, 0], sizes = [8, 32], strides = [1, 1]} : vector<8x128xf32> to vector<8x32xf32>
    %116 = vector.extract_strided_slice %113 {offsets = [0, 32], sizes = [8, 32], strides = [1, 1]} : vector<8x128xf32> to vector<8x32xf32>
    %117 = vector.extract_strided_slice %114 {offsets = [0, 64], sizes = [8, 32], strides = [1, 1]} : vector<8x128xf32> to vector<8x32xf32>
    %118 = vector.extract_strided_slice %113 {offsets = [0, 96], sizes = [8, 32], strides = [1, 1]} : vector<8x128xf32> to vector<8x32xf32>
    %119 = arith.mulf %116, %76 : vector<8x32xf32>
    %120 = arith.mulf %115, %117 : vector<8x32xf32>
    %121 = arith.addf %119, %120 : vector<8x32xf32>
    %122 = math.tanh %121 : vector<8x32xf32>
    %123 = arith.mulf %118, %122 : vector<8x32xf32>
    %124 = arith.truncf %123 : vector<8x32xf32> to vector<8x32xbf16>
    %cst_34 = arith.constant dense<0.000000e+00> : vector<8x128xf32>
    %125 = tpu.matmul %124, %1, %cst_34 {dimension_numbers = #tpu.dot_dimension_numbers<[1], [0], [0], [1], [0, 0, 1, 1], [], []>} : vector<8x32xbf16>, vector<32x128xbf16>, vector<8x128xf32> -> vector<8x128xf32>
    %126 = arith.truncf %101 : vector<8x32xf32> to vector<8x32xbf16>
    %cst_35 = arith.constant dense<0.000000e+00> : vector<8x128xf32>
    %127 = tpu.matmul %126, %2, %cst_35 {dimension_numbers = #tpu.dot_dimension_numbers<[1], [0], [0], [1], [0, 0, 1, 1], [], []>} : vector<8x32xbf16>, vector<32x128xbf16>, vector<8x128xf32> -> vector<8x128xf32>
    %128 = arith.addf %125, %127 : vector<8x128xf32>
    %129 = arith.addf %128, %7 : vector<8x128xf32>
    %cst_36 = arith.constant 5.000000e-01 : f32
    %130 = vector.broadcast %cst_36 : f32 to vector<8x128xf32>
    %131 = arith.mulf %130, %129 : vector<8x128xf32>
    %132 = math.tanh %131 : vector<8x128xf32>
    %cst_37 = arith.constant 1.000000e+00 : f32
    %133 = vector.broadcast %cst_37 : f32 to vector<8x128xf32>
    %134 = arith.addf %132, %133 : vector<8x128xf32>
    %cst_38 = arith.constant 5.000000e-01 : f32
    %135 = vector.broadcast %cst_38 : f32 to vector<8x128xf32>
    %136 = arith.mulf %135, %134 : vector<8x128xf32>
    %137 = math.tanh %129 : vector<8x128xf32>
    %138 = vector.extract_strided_slice %136 {offsets = [0, 0], sizes = [8, 32], strides = [1, 1]} : vector<8x128xf32> to vector<8x32xf32>
    %139 = vector.extract_strided_slice %136 {offsets = [0, 32], sizes = [8, 32], strides = [1, 1]} : vector<8x128xf32> to vector<8x32xf32>
    %140 = vector.extract_strided_slice %137 {offsets = [0, 64], sizes = [8, 32], strides = [1, 1]} : vector<8x128xf32> to vector<8x32xf32>
    %141 = vector.extract_strided_slice %136 {offsets = [0, 96], sizes = [8, 32], strides = [1, 1]} : vector<8x128xf32> to vector<8x32xf32>
    %142 = arith.mulf %139, %99 : vector<8x32xf32>
    %143 = arith.mulf %138, %140 : vector<8x32xf32>
    %144 = arith.addf %142, %143 : vector<8x32xf32>
    %145 = math.tanh %144 : vector<8x32xf32>
    %146 = arith.mulf %141, %145 : vector<8x32xf32>
    %147 = vector.extract_strided_slice %11 {offsets = [3, 0, 0], sizes = [1, 8, 128], strides = [1, 1, 1]} : vector<8x8x128xf32> to vector<1x8x128xf32>
    %148 = vector.shape_cast %147 : vector<1x8x128xf32> to vector<8x128xf32>
    %149 = arith.truncf %123 : vector<8x32xf32> to vector<8x32xbf16>
    %cst_39 = arith.constant dense<0.000000e+00> : vector<8x128xf32>
    %150 = tpu.matmul %149, %0, %cst_39 {dimension_numbers = #tpu.dot_dimension_numbers<[1], [0], [0], [1], [0, 0, 1, 1], [], []>} : vector<8x32xbf16>, vector<32x128xbf16>, vector<8x128xf32> -> vector<8x128xf32>
    %151 = arith.addf %148, %150 : vector<8x128xf32>
    %cst_40 = arith.constant 5.000000e-01 : f32
    %152 = vector.broadcast %cst_40 : f32 to vector<8x128xf32>
    %153 = arith.mulf %152, %151 : vector<8x128xf32>
    %154 = math.tanh %153 : vector<8x128xf32>
    %cst_41 = arith.constant 1.000000e+00 : f32
    %155 = vector.broadcast %cst_41 : f32 to vector<8x128xf32>
    %156 = arith.addf %154, %155 : vector<8x128xf32>
    %cst_42 = arith.constant 5.000000e-01 : f32
    %157 = vector.broadcast %cst_42 : f32 to vector<8x128xf32>
    %158 = arith.mulf %157, %156 : vector<8x128xf32>
    %159 = math.tanh %151 : vector<8x128xf32>
    %160 = vector.extract_strided_slice %158 {offsets = [0, 0], sizes = [8, 32], strides = [1, 1]} : vector<8x128xf32> to vector<8x32xf32>
    %161 = vector.extract_strided_slice %158 {offsets = [0, 32], sizes = [8, 32], strides = [1, 1]} : vector<8x128xf32> to vector<8x32xf32>
    %162 = vector.extract_strided_slice %159 {offsets = [0, 64], sizes = [8, 32], strides = [1, 1]} : vector<8x128xf32> to vector<8x32xf32>
    %163 = vector.extract_strided_slice %158 {offsets = [0, 96], sizes = [8, 32], strides = [1, 1]} : vector<8x128xf32> to vector<8x32xf32>
    %164 = arith.mulf %161, %121 : vector<8x32xf32>
    %165 = arith.mulf %160, %162 : vector<8x32xf32>
    %166 = arith.addf %164, %165 : vector<8x32xf32>
    %167 = math.tanh %166 : vector<8x32xf32>
    %168 = arith.mulf %163, %167 : vector<8x32xf32>
    %169 = arith.truncf %168 : vector<8x32xf32> to vector<8x32xbf16>
    %cst_43 = arith.constant dense<0.000000e+00> : vector<8x128xf32>
    %170 = tpu.matmul %169, %1, %cst_43 {dimension_numbers = #tpu.dot_dimension_numbers<[1], [0], [0], [1], [0, 0, 1, 1], [], []>} : vector<8x32xbf16>, vector<32x128xbf16>, vector<8x128xf32> -> vector<8x128xf32>
    %171 = arith.truncf %146 : vector<8x32xf32> to vector<8x32xbf16>
    %cst_44 = arith.constant dense<0.000000e+00> : vector<8x128xf32>
    %172 = tpu.matmul %171, %2, %cst_44 {dimension_numbers = #tpu.dot_dimension_numbers<[1], [0], [0], [1], [0, 0, 1, 1], [], []>} : vector<8x32xbf16>, vector<32x128xbf16>, vector<8x128xf32> -> vector<8x128xf32>
    %173 = arith.addf %170, %172 : vector<8x128xf32>
    %174 = arith.addf %173, %7 : vector<8x128xf32>
    %cst_45 = arith.constant 5.000000e-01 : f32
    %175 = vector.broadcast %cst_45 : f32 to vector<8x128xf32>
    %176 = arith.mulf %175, %174 : vector<8x128xf32>
    %177 = math.tanh %176 : vector<8x128xf32>
    %cst_46 = arith.constant 1.000000e+00 : f32
    %178 = vector.broadcast %cst_46 : f32 to vector<8x128xf32>
    %179 = arith.addf %177, %178 : vector<8x128xf32>
    %cst_47 = arith.constant 5.000000e-01 : f32
    %180 = vector.broadcast %cst_47 : f32 to vector<8x128xf32>
    %181 = arith.mulf %180, %179 : vector<8x128xf32>
    %182 = math.tanh %174 : vector<8x128xf32>
    %183 = vector.extract_strided_slice %181 {offsets = [0, 0], sizes = [8, 32], strides = [1, 1]} : vector<8x128xf32> to vector<8x32xf32>
    %184 = vector.extract_strided_slice %181 {offsets = [0, 32], sizes = [8, 32], strides = [1, 1]} : vector<8x128xf32> to vector<8x32xf32>
    %185 = vector.extract_strided_slice %182 {offsets = [0, 64], sizes = [8, 32], strides = [1, 1]} : vector<8x128xf32> to vector<8x32xf32>
    %186 = vector.extract_strided_slice %181 {offsets = [0, 96], sizes = [8, 32], strides = [1, 1]} : vector<8x128xf32> to vector<8x32xf32>
    %187 = arith.mulf %184, %144 : vector<8x32xf32>
    %188 = arith.mulf %183, %185 : vector<8x32xf32>
    %189 = arith.addf %187, %188 : vector<8x32xf32>
    %190 = math.tanh %189 : vector<8x32xf32>
    %191 = arith.mulf %186, %190 : vector<8x32xf32>
    %192 = vector.extract_strided_slice %11 {offsets = [4, 0, 0], sizes = [1, 8, 128], strides = [1, 1, 1]} : vector<8x8x128xf32> to vector<1x8x128xf32>
    %193 = vector.shape_cast %192 : vector<1x8x128xf32> to vector<8x128xf32>
    %194 = arith.truncf %168 : vector<8x32xf32> to vector<8x32xbf16>
    %cst_48 = arith.constant dense<0.000000e+00> : vector<8x128xf32>
    %195 = tpu.matmul %194, %0, %cst_48 {dimension_numbers = #tpu.dot_dimension_numbers<[1], [0], [0], [1], [0, 0, 1, 1], [], []>} : vector<8x32xbf16>, vector<32x128xbf16>, vector<8x128xf32> -> vector<8x128xf32>
    %196 = arith.addf %193, %195 : vector<8x128xf32>
    %cst_49 = arith.constant 5.000000e-01 : f32
    %197 = vector.broadcast %cst_49 : f32 to vector<8x128xf32>
    %198 = arith.mulf %197, %196 : vector<8x128xf32>
    %199 = math.tanh %198 : vector<8x128xf32>
    %cst_50 = arith.constant 1.000000e+00 : f32
    %200 = vector.broadcast %cst_50 : f32 to vector<8x128xf32>
    %201 = arith.addf %199, %200 : vector<8x128xf32>
    %cst_51 = arith.constant 5.000000e-01 : f32
    %202 = vector.broadcast %cst_51 : f32 to vector<8x128xf32>
    %203 = arith.mulf %202, %201 : vector<8x128xf32>
    %204 = math.tanh %196 : vector<8x128xf32>
    %205 = vector.extract_strided_slice %203 {offsets = [0, 0], sizes = [8, 32], strides = [1, 1]} : vector<8x128xf32> to vector<8x32xf32>
    %206 = vector.extract_strided_slice %203 {offsets = [0, 32], sizes = [8, 32], strides = [1, 1]} : vector<8x128xf32> to vector<8x32xf32>
    %207 = vector.extract_strided_slice %204 {offsets = [0, 64], sizes = [8, 32], strides = [1, 1]} : vector<8x128xf32> to vector<8x32xf32>
    %208 = vector.extract_strided_slice %203 {offsets = [0, 96], sizes = [8, 32], strides = [1, 1]} : vector<8x128xf32> to vector<8x32xf32>
    %209 = arith.mulf %206, %166 : vector<8x32xf32>
    %210 = arith.mulf %205, %207 : vector<8x32xf32>
    %211 = arith.addf %209, %210 : vector<8x32xf32>
    %212 = math.tanh %211 : vector<8x32xf32>
    %213 = arith.mulf %208, %212 : vector<8x32xf32>
    %214 = arith.truncf %213 : vector<8x32xf32> to vector<8x32xbf16>
    %cst_52 = arith.constant dense<0.000000e+00> : vector<8x128xf32>
    %215 = tpu.matmul %214, %1, %cst_52 {dimension_numbers = #tpu.dot_dimension_numbers<[1], [0], [0], [1], [0, 0, 1, 1], [], []>} : vector<8x32xbf16>, vector<32x128xbf16>, vector<8x128xf32> -> vector<8x128xf32>
    %216 = arith.truncf %191 : vector<8x32xf32> to vector<8x32xbf16>
    %cst_53 = arith.constant dense<0.000000e+00> : vector<8x128xf32>
    %217 = tpu.matmul %216, %2, %cst_53 {dimension_numbers = #tpu.dot_dimension_numbers<[1], [0], [0], [1], [0, 0, 1, 1], [], []>} : vector<8x32xbf16>, vector<32x128xbf16>, vector<8x128xf32> -> vector<8x128xf32>
    %218 = arith.addf %215, %217 : vector<8x128xf32>
    %219 = arith.addf %218, %7 : vector<8x128xf32>
    %cst_54 = arith.constant 5.000000e-01 : f32
    %220 = vector.broadcast %cst_54 : f32 to vector<8x128xf32>
    %221 = arith.mulf %220, %219 : vector<8x128xf32>
    %222 = math.tanh %221 : vector<8x128xf32>
    %cst_55 = arith.constant 1.000000e+00 : f32
    %223 = vector.broadcast %cst_55 : f32 to vector<8x128xf32>
    %224 = arith.addf %222, %223 : vector<8x128xf32>
    %cst_56 = arith.constant 5.000000e-01 : f32
    %225 = vector.broadcast %cst_56 : f32 to vector<8x128xf32>
    %226 = arith.mulf %225, %224 : vector<8x128xf32>
    %227 = math.tanh %219 : vector<8x128xf32>
    %228 = vector.extract_strided_slice %226 {offsets = [0, 0], sizes = [8, 32], strides = [1, 1]} : vector<8x128xf32> to vector<8x32xf32>
    %229 = vector.extract_strided_slice %226 {offsets = [0, 32], sizes = [8, 32], strides = [1, 1]} : vector<8x128xf32> to vector<8x32xf32>
    %230 = vector.extract_strided_slice %227 {offsets = [0, 64], sizes = [8, 32], strides = [1, 1]} : vector<8x128xf32> to vector<8x32xf32>
    %231 = vector.extract_strided_slice %226 {offsets = [0, 96], sizes = [8, 32], strides = [1, 1]} : vector<8x128xf32> to vector<8x32xf32>
    %232 = arith.mulf %229, %189 : vector<8x32xf32>
    %233 = arith.mulf %228, %230 : vector<8x32xf32>
    %234 = arith.addf %232, %233 : vector<8x32xf32>
    %235 = math.tanh %234 : vector<8x32xf32>
    %236 = arith.mulf %231, %235 : vector<8x32xf32>
    %237 = vector.extract_strided_slice %11 {offsets = [5, 0, 0], sizes = [1, 8, 128], strides = [1, 1, 1]} : vector<8x8x128xf32> to vector<1x8x128xf32>
    %238 = vector.shape_cast %237 : vector<1x8x128xf32> to vector<8x128xf32>
    %239 = arith.truncf %213 : vector<8x32xf32> to vector<8x32xbf16>
    %cst_57 = arith.constant dense<0.000000e+00> : vector<8x128xf32>
    %240 = tpu.matmul %239, %0, %cst_57 {dimension_numbers = #tpu.dot_dimension_numbers<[1], [0], [0], [1], [0, 0, 1, 1], [], []>} : vector<8x32xbf16>, vector<32x128xbf16>, vector<8x128xf32> -> vector<8x128xf32>
    %241 = arith.addf %238, %240 : vector<8x128xf32>
    %cst_58 = arith.constant 5.000000e-01 : f32
    %242 = vector.broadcast %cst_58 : f32 to vector<8x128xf32>
    %243 = arith.mulf %242, %241 : vector<8x128xf32>
    %244 = math.tanh %243 : vector<8x128xf32>
    %cst_59 = arith.constant 1.000000e+00 : f32
    %245 = vector.broadcast %cst_59 : f32 to vector<8x128xf32>
    %246 = arith.addf %244, %245 : vector<8x128xf32>
    %cst_60 = arith.constant 5.000000e-01 : f32
    %247 = vector.broadcast %cst_60 : f32 to vector<8x128xf32>
    %248 = arith.mulf %247, %246 : vector<8x128xf32>
    %249 = math.tanh %241 : vector<8x128xf32>
    %250 = vector.extract_strided_slice %248 {offsets = [0, 0], sizes = [8, 32], strides = [1, 1]} : vector<8x128xf32> to vector<8x32xf32>
    %251 = vector.extract_strided_slice %248 {offsets = [0, 32], sizes = [8, 32], strides = [1, 1]} : vector<8x128xf32> to vector<8x32xf32>
    %252 = vector.extract_strided_slice %249 {offsets = [0, 64], sizes = [8, 32], strides = [1, 1]} : vector<8x128xf32> to vector<8x32xf32>
    %253 = vector.extract_strided_slice %248 {offsets = [0, 96], sizes = [8, 32], strides = [1, 1]} : vector<8x128xf32> to vector<8x32xf32>
    %254 = arith.mulf %251, %211 : vector<8x32xf32>
    %255 = arith.mulf %250, %252 : vector<8x32xf32>
    %256 = arith.addf %254, %255 : vector<8x32xf32>
    %257 = math.tanh %256 : vector<8x32xf32>
    %258 = arith.mulf %253, %257 : vector<8x32xf32>
    %259 = arith.truncf %258 : vector<8x32xf32> to vector<8x32xbf16>
    %cst_61 = arith.constant dense<0.000000e+00> : vector<8x128xf32>
    %260 = tpu.matmul %259, %1, %cst_61 {dimension_numbers = #tpu.dot_dimension_numbers<[1], [0], [0], [1], [0, 0, 1, 1], [], []>} : vector<8x32xbf16>, vector<32x128xbf16>, vector<8x128xf32> -> vector<8x128xf32>
    %261 = arith.truncf %236 : vector<8x32xf32> to vector<8x32xbf16>
    %cst_62 = arith.constant dense<0.000000e+00> : vector<8x128xf32>
    %262 = tpu.matmul %261, %2, %cst_62 {dimension_numbers = #tpu.dot_dimension_numbers<[1], [0], [0], [1], [0, 0, 1, 1], [], []>} : vector<8x32xbf16>, vector<32x128xbf16>, vector<8x128xf32> -> vector<8x128xf32>
    %263 = arith.addf %260, %262 : vector<8x128xf32>
    %264 = arith.addf %263, %7 : vector<8x128xf32>
    %cst_63 = arith.constant 5.000000e-01 : f32
    %265 = vector.broadcast %cst_63 : f32 to vector<8x128xf32>
    %266 = arith.mulf %265, %264 : vector<8x128xf32>
    %267 = math.tanh %266 : vector<8x128xf32>
    %cst_64 = arith.constant 1.000000e+00 : f32
    %268 = vector.broadcast %cst_64 : f32 to vector<8x128xf32>
    %269 = arith.addf %267, %268 : vector<8x128xf32>
    %cst_65 = arith.constant 5.000000e-01 : f32
    %270 = vector.broadcast %cst_65 : f32 to vector<8x128xf32>
    %271 = arith.mulf %270, %269 : vector<8x128xf32>
    %272 = math.tanh %264 : vector<8x128xf32>
    %273 = vector.extract_strided_slice %271 {offsets = [0, 0], sizes = [8, 32], strides = [1, 1]} : vector<8x128xf32> to vector<8x32xf32>
    %274 = vector.extract_strided_slice %271 {offsets = [0, 32], sizes = [8, 32], strides = [1, 1]} : vector<8x128xf32> to vector<8x32xf32>
    %275 = vector.extract_strided_slice %272 {offsets = [0, 64], sizes = [8, 32], strides = [1, 1]} : vector<8x128xf32> to vector<8x32xf32>
    %276 = vector.extract_strided_slice %271 {offsets = [0, 96], sizes = [8, 32], strides = [1, 1]} : vector<8x128xf32> to vector<8x32xf32>
    %277 = arith.mulf %274, %234 : vector<8x32xf32>
    %278 = arith.mulf %273, %275 : vector<8x32xf32>
    %279 = arith.addf %277, %278 : vector<8x32xf32>
    %280 = math.tanh %279 : vector<8x32xf32>
    %281 = arith.mulf %276, %280 : vector<8x32xf32>
    %282 = vector.extract_strided_slice %11 {offsets = [6, 0, 0], sizes = [1, 8, 128], strides = [1, 1, 1]} : vector<8x8x128xf32> to vector<1x8x128xf32>
    %283 = vector.shape_cast %282 : vector<1x8x128xf32> to vector<8x128xf32>
    %284 = arith.truncf %258 : vector<8x32xf32> to vector<8x32xbf16>
    %cst_66 = arith.constant dense<0.000000e+00> : vector<8x128xf32>
    %285 = tpu.matmul %284, %0, %cst_66 {dimension_numbers = #tpu.dot_dimension_numbers<[1], [0], [0], [1], [0, 0, 1, 1], [], []>} : vector<8x32xbf16>, vector<32x128xbf16>, vector<8x128xf32> -> vector<8x128xf32>
    %286 = arith.addf %283, %285 : vector<8x128xf32>
    %cst_67 = arith.constant 5.000000e-01 : f32
    %287 = vector.broadcast %cst_67 : f32 to vector<8x128xf32>
    %288 = arith.mulf %287, %286 : vector<8x128xf32>
    %289 = math.tanh %288 : vector<8x128xf32>
    %cst_68 = arith.constant 1.000000e+00 : f32
    %290 = vector.broadcast %cst_68 : f32 to vector<8x128xf32>
    %291 = arith.addf %289, %290 : vector<8x128xf32>
    %cst_69 = arith.constant 5.000000e-01 : f32
    %292 = vector.broadcast %cst_69 : f32 to vector<8x128xf32>
    %293 = arith.mulf %292, %291 : vector<8x128xf32>
    %294 = math.tanh %286 : vector<8x128xf32>
    %295 = vector.extract_strided_slice %293 {offsets = [0, 0], sizes = [8, 32], strides = [1, 1]} : vector<8x128xf32> to vector<8x32xf32>
    %296 = vector.extract_strided_slice %293 {offsets = [0, 32], sizes = [8, 32], strides = [1, 1]} : vector<8x128xf32> to vector<8x32xf32>
    %297 = vector.extract_strided_slice %294 {offsets = [0, 64], sizes = [8, 32], strides = [1, 1]} : vector<8x128xf32> to vector<8x32xf32>
    %298 = vector.extract_strided_slice %293 {offsets = [0, 96], sizes = [8, 32], strides = [1, 1]} : vector<8x128xf32> to vector<8x32xf32>
    %299 = arith.mulf %296, %256 : vector<8x32xf32>
    %300 = arith.mulf %295, %297 : vector<8x32xf32>
    %301 = arith.addf %299, %300 : vector<8x32xf32>
    %302 = math.tanh %301 : vector<8x32xf32>
    %303 = arith.mulf %298, %302 : vector<8x32xf32>
    %304 = arith.truncf %303 : vector<8x32xf32> to vector<8x32xbf16>
    %cst_70 = arith.constant dense<0.000000e+00> : vector<8x128xf32>
    %305 = tpu.matmul %304, %1, %cst_70 {dimension_numbers = #tpu.dot_dimension_numbers<[1], [0], [0], [1], [0, 0, 1, 1], [], []>} : vector<8x32xbf16>, vector<32x128xbf16>, vector<8x128xf32> -> vector<8x128xf32>
    %306 = arith.truncf %281 : vector<8x32xf32> to vector<8x32xbf16>
    %cst_71 = arith.constant dense<0.000000e+00> : vector<8x128xf32>
    %307 = tpu.matmul %306, %2, %cst_71 {dimension_numbers = #tpu.dot_dimension_numbers<[1], [0], [0], [1], [0, 0, 1, 1], [], []>} : vector<8x32xbf16>, vector<32x128xbf16>, vector<8x128xf32> -> vector<8x128xf32>
    %308 = arith.addf %305, %307 : vector<8x128xf32>
    %309 = arith.addf %308, %7 : vector<8x128xf32>
    %cst_72 = arith.constant 5.000000e-01 : f32
    %310 = vector.broadcast %cst_72 : f32 to vector<8x128xf32>
    %311 = arith.mulf %310, %309 : vector<8x128xf32>
    %312 = math.tanh %311 : vector<8x128xf32>
    %cst_73 = arith.constant 1.000000e+00 : f32
    %313 = vector.broadcast %cst_73 : f32 to vector<8x128xf32>
    %314 = arith.addf %312, %313 : vector<8x128xf32>
    %cst_74 = arith.constant 5.000000e-01 : f32
    %315 = vector.broadcast %cst_74 : f32 to vector<8x128xf32>
    %316 = arith.mulf %315, %314 : vector<8x128xf32>
    %317 = math.tanh %309 : vector<8x128xf32>
    %318 = vector.extract_strided_slice %316 {offsets = [0, 0], sizes = [8, 32], strides = [1, 1]} : vector<8x128xf32> to vector<8x32xf32>
    %319 = vector.extract_strided_slice %316 {offsets = [0, 32], sizes = [8, 32], strides = [1, 1]} : vector<8x128xf32> to vector<8x32xf32>
    %320 = vector.extract_strided_slice %317 {offsets = [0, 64], sizes = [8, 32], strides = [1, 1]} : vector<8x128xf32> to vector<8x32xf32>
    %321 = vector.extract_strided_slice %316 {offsets = [0, 96], sizes = [8, 32], strides = [1, 1]} : vector<8x128xf32> to vector<8x32xf32>
    %322 = arith.mulf %319, %279 : vector<8x32xf32>
    %323 = arith.mulf %318, %320 : vector<8x32xf32>
    %324 = arith.addf %322, %323 : vector<8x32xf32>
    %325 = math.tanh %324 : vector<8x32xf32>
    %326 = arith.mulf %321, %325 : vector<8x32xf32>
    %327 = vector.extract_strided_slice %11 {offsets = [7, 0, 0], sizes = [1, 8, 128], strides = [1, 1, 1]} : vector<8x8x128xf32> to vector<1x8x128xf32>
    %328 = vector.shape_cast %327 : vector<1x8x128xf32> to vector<8x128xf32>
    %329 = arith.truncf %303 : vector<8x32xf32> to vector<8x32xbf16>
    %cst_75 = arith.constant dense<0.000000e+00> : vector<8x128xf32>
    %330 = tpu.matmul %329, %0, %cst_75 {dimension_numbers = #tpu.dot_dimension_numbers<[1], [0], [0], [1], [0, 0, 1, 1], [], []>} : vector<8x32xbf16>, vector<32x128xbf16>, vector<8x128xf32> -> vector<8x128xf32>
    %331 = arith.addf %328, %330 : vector<8x128xf32>
    %cst_76 = arith.constant 5.000000e-01 : f32
    %332 = vector.broadcast %cst_76 : f32 to vector<8x128xf32>
    %333 = arith.mulf %332, %331 : vector<8x128xf32>
    %334 = math.tanh %333 : vector<8x128xf32>
    %cst_77 = arith.constant 1.000000e+00 : f32
    %335 = vector.broadcast %cst_77 : f32 to vector<8x128xf32>
    %336 = arith.addf %334, %335 : vector<8x128xf32>
    %cst_78 = arith.constant 5.000000e-01 : f32
    %337 = vector.broadcast %cst_78 : f32 to vector<8x128xf32>
    %338 = arith.mulf %337, %336 : vector<8x128xf32>
    %339 = math.tanh %331 : vector<8x128xf32>
    %340 = vector.extract_strided_slice %338 {offsets = [0, 0], sizes = [8, 32], strides = [1, 1]} : vector<8x128xf32> to vector<8x32xf32>
    %341 = vector.extract_strided_slice %338 {offsets = [0, 32], sizes = [8, 32], strides = [1, 1]} : vector<8x128xf32> to vector<8x32xf32>
    %342 = vector.extract_strided_slice %339 {offsets = [0, 64], sizes = [8, 32], strides = [1, 1]} : vector<8x128xf32> to vector<8x32xf32>
    %343 = vector.extract_strided_slice %338 {offsets = [0, 96], sizes = [8, 32], strides = [1, 1]} : vector<8x128xf32> to vector<8x32xf32>
    %344 = arith.mulf %341, %301 : vector<8x32xf32>
    %345 = arith.mulf %340, %342 : vector<8x32xf32>
    %346 = arith.addf %344, %345 : vector<8x32xf32>
    %347 = math.tanh %346 : vector<8x32xf32>
    %348 = arith.mulf %343, %347 : vector<8x32xf32>
    %349 = arith.truncf %348 : vector<8x32xf32> to vector<8x32xbf16>
    %cst_79 = arith.constant dense<0.000000e+00> : vector<8x128xf32>
    %350 = tpu.matmul %349, %1, %cst_79 {dimension_numbers = #tpu.dot_dimension_numbers<[1], [0], [0], [1], [0, 0, 1, 1], [], []>} : vector<8x32xbf16>, vector<32x128xbf16>, vector<8x128xf32> -> vector<8x128xf32>
    %351 = arith.truncf %326 : vector<8x32xf32> to vector<8x32xbf16>
    %cst_80 = arith.constant dense<0.000000e+00> : vector<8x128xf32>
    %352 = tpu.matmul %351, %2, %cst_80 {dimension_numbers = #tpu.dot_dimension_numbers<[1], [0], [0], [1], [0, 0, 1, 1], [], []>} : vector<8x32xbf16>, vector<32x128xbf16>, vector<8x128xf32> -> vector<8x128xf32>
    %353 = arith.addf %350, %352 : vector<8x128xf32>
    %354 = arith.addf %353, %7 : vector<8x128xf32>
    %cst_81 = arith.constant 5.000000e-01 : f32
    %355 = vector.broadcast %cst_81 : f32 to vector<8x128xf32>
    %356 = arith.mulf %355, %354 : vector<8x128xf32>
    %357 = math.tanh %356 : vector<8x128xf32>
    %cst_82 = arith.constant 1.000000e+00 : f32
    %358 = vector.broadcast %cst_82 : f32 to vector<8x128xf32>
    %359 = arith.addf %357, %358 : vector<8x128xf32>
    %cst_83 = arith.constant 5.000000e-01 : f32
    %360 = vector.broadcast %cst_83 : f32 to vector<8x128xf32>
    %361 = arith.mulf %360, %359 : vector<8x128xf32>
    %362 = math.tanh %354 : vector<8x128xf32>
    %363 = vector.extract_strided_slice %361 {offsets = [0, 0], sizes = [8, 32], strides = [1, 1]} : vector<8x128xf32> to vector<8x32xf32>
    %364 = vector.extract_strided_slice %361 {offsets = [0, 32], sizes = [8, 32], strides = [1, 1]} : vector<8x128xf32> to vector<8x32xf32>
    %365 = vector.extract_strided_slice %362 {offsets = [0, 64], sizes = [8, 32], strides = [1, 1]} : vector<8x128xf32> to vector<8x32xf32>
    %366 = vector.extract_strided_slice %361 {offsets = [0, 96], sizes = [8, 32], strides = [1, 1]} : vector<8x128xf32> to vector<8x32xf32>
    %367 = arith.mulf %364, %324 : vector<8x32xf32>
    %368 = arith.mulf %363, %365 : vector<8x32xf32>
    %369 = arith.addf %367, %368 : vector<8x32xf32>
    %370 = math.tanh %369 : vector<8x32xf32>
    %371 = arith.mulf %366, %370 : vector<8x32xf32>
    %372 = arith.truncf %371 : vector<8x32xf32> to vector<8x32xbf16>
    %cst_84 = arith.constant dense<0.000000e+00> : vector<8x128xf32>
    %373 = tpu.matmul %372, %3, %cst_84 {dimension_numbers = #tpu.dot_dimension_numbers<[1], [0], [0], [1], [0, 0, 1, 1], [], []>} : vector<8x32xbf16>, vector<32x128xbf16>, vector<8x128xf32> -> vector<8x128xf32>
    %374 = vector.broadcast %8 : vector<1x128xf32> to vector<8x128xf32>
    %375 = arith.addf %373, %374 : vector<8x128xf32>
    %cst_85 = arith.constant 0.000000e+00 : f32
    %376 = vector.broadcast %cst_85 : f32 to vector<8x128xf32>
    %377 = arith.maximumf %375, %376 : vector<8x128xf32>
    %378 = arith.truncf %377 : vector<8x128xf32> to vector<8x128xbf16>
    %cst_86 = arith.constant dense<0.000000e+00> : vector<8x128xf32>
    %379 = tpu.matmul %378, %4, %cst_86 {dimension_numbers = #tpu.dot_dimension_numbers<[1], [0], [0], [1], [0, 0, 1, 1], [], []>} : vector<8x128xbf16>, vector<128x128xbf16>, vector<8x128xf32> -> vector<8x128xf32>
    %380 = vector.broadcast %9 : vector<1x128xf32> to vector<8x128xf32>
    %381 = arith.addf %379, %380 : vector<8x128xf32>
    %c0_87 = arith.constant 0 : index
    %c0_88 = arith.constant 0 : index
    %382 = vector.load %arg3[%c0_87, %c0_88] : memref<8x128xf32, #tpu.memory_space<vmem>>, vector<8x128xf32>
    tpu.vector_store %arg3[%c0_87, %c0_88], %381 {strides = array<i32>} : memref<8x128xf32, #tpu.memory_space<vmem>>, vector<8x128xf32>,
    return
  }
}

</mosaic_0001>

<llo_original>
// kernel: tpu_custom_call.1
$region0: #{tpu_custom_call.1}
  #allocation0 [shape = 'u32[]', space=smem, size = 0x4, offset = 0x4, fixed_abs, tag = 'smem constant byte address 0x4 - core index']
  #allocation1 [shape = 'u32[144,128]{1,0:T(1,128)}', space=vmem, size = 0x12000, scoped, tag = 'internal scratch']
  %s0 = inlined_call_operand.hbm [shape: f32[8,8,128], index: 0, kind: input, shape index: {}]
  %s1 = inlined_call_operand.hbm [shape: bf16[256,128], index: 1, kind: input, shape index: {}]
  %s2 = inlined_call_operand.hbm [shape: f32[8,128], index: 2, kind: input, shape index: {}]
  %s3 = inlined_call_operand.hbm [shape: f32[8,128], index: 3, kind: output, shape index: {}]
  %s4 = sld [smem:[#allocation0]]
  $region34: #{tpu_custom_call.1} parent=0
    _
  %s6 = ssub.s32 1, %s4
  %s7 = scalar_select 0, %s6, %s4
  $region1: #{tpu_custom_call.1} parent=0
    #allocation2 [shape = 'u8[32768]{0}', space=vmem, size = 0x8000, scoped, tag = 'input window, operand 0, single buffered']
    #allocation3 [shape = 's32[1]{0}', space=sflag, size = 0x4, scoped, tag = 'scoped memory for tpu_custom_call.1']
    #allocation4 [shape = 's32[1]{0}', space=sflag, size = 0x4, scoped, tag = 'scoped memory for tpu_custom_call.1']
    #allocation5 [shape = 'u8[65536]{0}', space=vmem, size = 0x10000, scoped, tag = 'input window, operand 1, single buffered']
    #allocation6 [shape = 's32[1]{0}', space=sflag, size = 0x4, scoped, tag = 'scoped memory for tpu_custom_call.1']
    #allocation7 [shape = 'u8[4096]{0}', space=vmem, size = 0x1000, scoped, tag = 'input window, operand 2, single buffered']
    #allocation8 [shape = 'u8[4096]{0}', space=vmem, size = 0x1000, scoped, tag = 'output window, operand 0, single buffered']
    %8 = vsyncpa [#allocation3], 0
    %9 = vsyncpa [#allocation6], 0
    %10 = vsyncpa [#allocation4], 0
    // Predicated region
    $region2: #{tpu_custom_call.1} parent=1 // pred_check
      _
    $region3: #{tpu_custom_call.1} parent=1 // pred_check_branch
      %12 = sbr.rel (0) target = $region5
    $region4: #{tpu_custom_call.1} parent=1 // pred_region
      %s14 = ssub.s32 1024, 1024
      %15 = vsyncadd [#allocation3], %s14
      %s16 = sshll.u32 [#allocation2], 4
      %s17 = int_to_ptr.vmem [resolvable:$true] %s16
      %22 = dma.hbm_to_vmem [thread:$0]  %s0, 1024, %s17, [#allocation3], 128, 128, 8
    $region5: #{tpu_custom_call.1} parent=1 // pred_fallthru
      _
    // Predicated region
    $region6: #{tpu_custom_call.1} parent=1 // pred_check
      _
    $region7: #{tpu_custom_call.1} parent=1 // pred_check_branch
      %24 = sbr.rel (0) target = $region9
    $region8: #{tpu_custom_call.1} parent=1 // pred_region
      %s26 = ssub.s32 2048, 2048
      %27 = vsyncadd [#allocation6], %s26
      %s28 = sshll.u32 [#allocation5], 4
      %s29 = int_to_ptr.vmem [resolvable:$true] %s28
      %34 = dma.hbm_to_vmem [thread:$0]  %s1, 2048, %s29, [#allocation6], 64, 64, 4
    $region9: #{tpu_custom_call.1} parent=1 // pred_fallthru
      _
    // Predicated region
    $region10: #{tpu_custom_call.1} parent=1 // pred_check
      _
    $region11: #{tpu_custom_call.1} parent=1 // pred_check_branch
      %36 = sbr.rel (0) target = $region13
    $region12: #{tpu_custom_call.1} parent=1 // pred_region
      %s38 = ssub.s32 128, 128
      %39 = vsyncadd [#allocation6], %s38
      %s41 = sshll.u32 [#allocation7], 4
      %s42 = int_to_ptr.vmem [resolvable:$true] %s41
      %44 = dma.hbm_to_vmem [thread:$0]  %s2, 128, %s42, [#allocation6]
    $region13: #{tpu_custom_call.1} parent=1 // pred_fallthru
      _
    // Predicated region
    $region14: #{tpu_custom_call.1} parent=1 // pred_check
      _
    $region15: #{tpu_custom_call.1} parent=1 // pred_check_branch
      %46 = sbr.rel (0) target = $region17
    $region16: #{tpu_custom_call.1} parent=1 // pred_region
      %47 = dma.done [#allocation3], 1024
    $region17: #{tpu_custom_call.1} parent=1 // pred_fallthru
      _
    // Predicated region
    $region18: #{tpu_custom_call.1} parent=1 // pred_check
      _
    $region19: #{tpu_custom_call.1} parent=1 // pred_check_branch
      %49 = sbr.rel (0) target = $region21
    $region20: #{tpu_custom_call.1} parent=1 // pred_region
      %50 = dma.done [#allocation6], 2048
    $region21: #{tpu_custom_call.1} parent=1 // pred_fallthru
      _
    // Predicated region
    $region22: #{tpu_custom_call.1} parent=1 // pred_check
      _
    $region23: #{tpu_custom_call.1} parent=1 // pred_check_branch
      %52 = sbr.rel (0) target = $region25
    $region24: #{tpu_custom_call.1} parent=1 // pred_region
      %53 = dma.done [#allocation6], 128
    $region25: #{tpu_custom_call.1} parent=1 // pred_fallthru
      _
    %v55 = vld [vmem:[#allocation5] sm:$0xf]
    %v56 = vld [vmem:[#allocation5 + $0x4] sm:$0xf]
    %v57 = vld [vmem:[#allocation5 + $0x8] sm:$0xf]
    %v58 = vld [vmem:[#allocation5 + $0xc] sm:$0xf]
    %v59 = vld [vmem:[#allocation5 + $0x10] sm:$0xf]
    %v60 = vld [vmem:[#allocation5 + $0x14] sm:$0xf]
    %v61 = vld [vmem:[#allocation5 + $0x18] sm:$0xf]
    %v62 = vld [vmem:[#allocation5 + $0x1c] sm:$0xf]
    %v63 = vld [vmem:[#allocation5 + $0x20] sm:$0xf]
    %v64 = vld [vmem:[#allocation5 + $0x24] sm:$0xf]
    %v65 = vld [vmem:[#allocation5 + $0x28] sm:$0xf]
    %v66 = vld [vmem:[#allocation5 + $0x2c] sm:$0xf]
    %v67 = vld [vmem:[#allocation5 + $0x30] sm:$0xf]
    %v68 = vld [vmem:[#allocation5 + $0x34] sm:$0xf]
    %v69 = vld [vmem:[#allocation5 + $0x38] sm:$0xf]
    %v70 = vld [vmem:[#allocation5 + $0x3c] sm:$0xf]
    %v71 = vld [vmem:[#allocation5 + $0x40] sm:$0xf]
    %v72 = vld [vmem:[#allocation5 + $0x44] sm:$0xf]
    %v73 = vld [vmem:[#allocation5 + $0x48] sm:$0xf]
    %v74 = vld [vmem:[#allocation5 + $0x4c] sm:$0xf]
    %v75 = vld [vmem:[#allocation5 + $0x50] sm:$0xf]
    %v76 = vld [vmem:[#allocation5 + $0x54] sm:$0xf]
    %v77 = vld [vmem:[#allocation5 + $0x58] sm:$0xf]
    %v78 = vld [vmem:[#allocation5 + $0x5c] sm:$0xf]
    %v79 = vld [vmem:[#allocation5 + $0x60] sm:$0xf]
    %v80 = vld [vmem:[#allocation5 + $0x64] sm:$0xf]
    %v81 = vld [vmem:[#allocation5 + $0x68] sm:$0xf]
    %v82 = vld [vmem:[#allocation5 + $0x6c] sm:$0xf]
    %v83 = vld [vmem:[#allocation5 + $0x70] sm:$0xf]
    %v84 = vld [vmem:[#allocation5 + $0x74] sm:$0xf]
    %v85 = vld [vmem:[#allocation5 + $0x78] sm:$0xf]
    %v86 = vld [vmem:[#allocation5 + $0x7c] sm:$0xf]
    %v87 = vld [vmem:[#allocation7] sm:$0x1]
    %v88 = vlaneseq
    %v89 = vshrl.u32 %v88, 7
    %v90 = vsub.s32 0, %v89
    %v91 = vrot.slane %v87, %v90
    %v92 = vld [vmem:[#allocation7 + $0x1] sm:$0x1]
    %v93 = vld [vmem:[#allocation7 + $0x2] sm:$0x1]
    %v94 = vld [vmem:[#allocation2] sm:$0xff]
    %v95 = vld [vmem:[#allocation2 + $0x8] sm:$0xff]
    %v96 = vld [vmem:[#allocation2 + $0x10] sm:$0xff]
    %v97 = vld [vmem:[#allocation2 + $0x18] sm:$0xff]
    %v98 = vld [vmem:[#allocation2 + $0x20] sm:$0xff]
    %v99 = vld [vmem:[#allocation2 + $0x28] sm:$0xff]
    %v100 = vld [vmem:[#allocation2 + $0x30] sm:$0xff]
    %v101 = vld [vmem:[#allocation2 + $0x38] sm:$0xff]
    %v106 = vunpack.c.l.b16 %v55
    %v107 = vunpack.c.l.b16 %v56
    %v108 = vunpack.c.l.b16 %v57
    %v109 = vunpack.c.l.b16 %v58
    %v110 = vpack.c.b16 %v107, %v106
    %v111 = vpack.c.b16 %v109, %v108
    %vm114 = vcmask 261120
    %v116 = vsel %vm114, 0, 0
    %118 = vmatprep.subr.bf16.mxu0 0
    %119 = vmatpush1.bf16.msra.mxu0 %v110
    %120 = vmatprep.subr.bf16.mxu0 0
    %121 = vmatpush1.bf16.msra.mxu0 %v111
    %122 = vmatprep.subr.bf16.mxu0 0
    %123 = vmatpush1.bf16.msra.mxu0 0
    %124 = vmatprep.subr.bf16.mxu0 0
    %125 = vmatpush1.bf16.msra.mxu0 0
    %126 = vmatprep.subr.bf16.mxu0 0
    %127 = vmatpush1.bf16.msra.mxu0 0
    %128 = vmatprep.subr.bf16.mxu0 0
    %129 = vmatpush1.bf16.msra.mxu0 0
    %130 = vmatprep.subr.bf16.mxu0 0
    %131 = vmatpush1.bf16.msra.mxu0 0
    %132 = vmatprep.subr.bf16.mxu0 0
    %133 = vmatpush1.bf16.msra.mxu0 0
    %134 = vmatprep.subr.bf16.mxu0 0
    %135 = vmatpush1.bf16.msra.mxu0 0
    %136 = vmatprep.subr.bf16.mxu0 0
    %137 = vmatpush1.bf16.msra.mxu0 0
    %138 = vmatprep.subr.bf16.mxu0 0
    %139 = vmatpush1.bf16.msra.mxu0 0
    %140 = vmatprep.subr.bf16.mxu0 0
    %141 = vmatpush1.bf16.msra.mxu0 0
    %142 = vmatprep.subr.bf16.mxu0 0
    %143 = vmatpush1.bf16.msra.mxu0 0
    %144 = vmatprep.subr.bf16.mxu0 0
    %145 = vmatpush1.bf16.msra.mxu0 0
    %146 = vmatprep.subr.bf16.mxu0 0
    %147 = vmatpush1.bf16.msra.mxu0 0
    %148 = vmatprep.subr.bf16.mxu0 0
    %149 = vmatpush1.bf16.msra.mxu0 0
    %150 = vmatprep.mubr.bf16.mxu0 0
    %151 = vmatmul.mubr.bf16.gmra.mrb[0].mxu0 %v116
    %v152 = vpop.f32.mrb[0].mxu0
    %v153 = vadd.f32 0.0, %v152
    %v154 = vpop.f32.mrb[0].mxu0
    %v155 = vpop.f32.mrb[0].mxu0
    %v156 = vpop.f32.mrb[0].mxu0
    %157 = vdwg.mxu0
    %v158 = vadd.f32 %v94, %v153
    %v159 = vmul.f32 %v158, 0.5
    %v160 = vtanh.pop %v159
    %v161 = vadd.f32 %v160, 1.0
    %v162 = vmul.f32 %v161, 0.5
    %v163 = vtanh.pop %v158
    %v164 = vmul.f32 %v162, 0.0
    %166 = vrot.lane.b32.xlu0 %v163, 64
    %v167 = vpop.permute.xlu0 %166
    %v169 = vmul.f32 %v162, %v167
    %171 = vrot.lane.b32.xlu0 %v169, 32
    %v172 = vpop.permute.xlu0 %171
    %v174 = vadd.f32 %v164, %v172
    %v175 = vtanh.pop %v174
    %177 = vrot.lane.b32.xlu0 %v175, 64
    %v178 = vpop.permute.xlu0 %177
    %v180 = vmul.f32 %v162, %v178
    %v181 = vpack.c.bf16 %v180, %v180
    %v186 = vunpack.c.l.b16 %v63
    %v187 = vunpack.c.l.b16 %v64
    %v188 = vunpack.c.l.b16 %v65
    %v189 = vunpack.c.l.b16 %v66
    %v190 = vpack.c.b16 %v187, %v186
    %v191 = vpack.c.b16 %v189, %v188
    %194 = vmatprep.subr.bf16.mxu0 0
    %195 = vmatpush1.bf16.msra.mxu0 %v190
    %196 = vmatprep.subr.bf16.mxu0 0
    %197 = vmatpush1.bf16.msra.mxu0 %v191
    %198 = vmatprep.subr.bf16.mxu0 0
    %199 = vmatpush1.bf16.msra.mxu0 0
    %200 = vmatprep.subr.bf16.mxu0 0
    %201 = vmatpush1.bf16.msra.mxu0 0
    %202 = vmatprep.subr.bf16.mxu0 0
    %203 = vmatpush1.bf16.msra.mxu0 0
    %204 = vmatprep.subr.bf16.mxu0 0
    %205 = vmatpush1.bf16.msra.mxu0 0
    %206 = vmatprep.subr.bf16.mxu0 0
    %207 = vmatpush1.bf16.msra.mxu0 0
    %208 = vmatprep.subr.bf16.mxu0 0
    %209 = vmatpush1.bf16.msra.mxu0 0
    %210 = vmatprep.subr.bf16.mxu0 0
    %211 = vmatpush1.bf16.msra.mxu0 0
    %212 = vmatprep.subr.bf16.mxu0 0
    %213 = vmatpush1.bf16.msra.mxu0 0
    %214 = vmatprep.subr.bf16.mxu0 0
    %215 = vmatpush1.bf16.msra.mxu0 0
    %216 = vmatprep.subr.bf16.mxu0 0
    %217 = vmatpush1.bf16.msra.mxu0 0
    %218 = vmatprep.subr.bf16.mxu0 0
    %219 = vmatpush1.bf16.msra.mxu0 0
    %220 = vmatprep.subr.bf16.mxu0 0
    %221 = vmatpush1.bf16.msra.mxu0 0
    %222 = vmatprep.subr.bf16.mxu0 0
    %223 = vmatpush1.bf16.msra.mxu0 0
    %224 = vmatprep.subr.bf16.mxu0 0
    %225 = vmatpush1.bf16.msra.mxu0 0
    %226 = vmatprep.mubr.bf16.mxu0 0
    %227 = vmatmul.mubr.bf16.gmra.mrb[0].mxu0 %v116
    %v228 = vpop.f32.mrb[0].mxu0
    %v229 = vadd.f32 0.0, %v228
    %v230 = vpop.f32.mrb[0].mxu0
    %v231 = vpop.f32.mrb[0].mxu0
    %v232 = vpop.f32.mrb[0].mxu0
    %233 = vdwg.mxu0
    %235 = vrot.lane.b32.xlu0 %v181, 32
    %v236 = vpop.permute.xlu0 %235
    %v241 = vunpack.c.l.b16 %v59
    %v242 = vunpack.c.l.b16 %v60
    %v243 = vunpack.c.l.b16 %v61
    %v244 = vunpack.c.l.b16 %v62
    %v245 = vpack.c.b16 %v242, %v241
    %v246 = vpack.c.b16 %v244, %v243
    %v250 = vsel %vm114, %v236, 0
    %252 = vmatprep.subr.bf16.mxu0 0
    %253 = vmatpush1.bf16.msra.mxu0 %v245
    %254 = vmatprep.subr.bf16.mxu0 0
    %255 = vmatpush1.bf16.msra.mxu0 %v246
    %256 = vmatprep.subr.bf16.mxu0 0
    %257 = vmatpush1.bf16.msra.mxu0 0
    %258 = vmatprep.subr.bf16.mxu0 0
    %259 = vmatpush1.bf16.msra.mxu0 0
    %260 = vmatprep.subr.bf16.mxu0 0
    %261 = vmatpush1.bf16.msra.mxu0 0
    %262 = vmatprep.subr.bf16.mxu0 0
    %263 = vmatpush1.bf16.msra.mxu0 0
    %264 = vmatprep.subr.bf16.mxu0 0
    %265 = vmatpush1.bf16.msra.mxu0 0
    %266 = vmatprep.subr.bf16.mxu0 0
    %267 = vmatpush1.bf16.msra.mxu0 0
    %268 = vmatprep.subr.bf16.mxu0 0
    %269 = vmatpush1.bf16.msra.mxu0 0
    %270 = vmatprep.subr.bf16.mxu0 0
    %271 = vmatpush1.bf16.msra.mxu0 0
    %272 = vmatprep.subr.bf16.mxu0 0
    %273 = vmatpush1.bf16.msra.mxu0 0
    %274 = vmatprep.subr.bf16.mxu0 0
    %275 = vmatpush1.bf16.msra.mxu0 0
    %276 = vmatprep.subr.bf16.mxu0 0
    %277 = vmatpush1.bf16.msra.mxu0 0
    %278 = vmatprep.subr.bf16.mxu0 0
    %279 = vmatpush1.bf16.msra.mxu0 0
    %280 = vmatprep.subr.bf16.mxu0 0
    %281 = vmatpush1.bf16.msra.mxu0 0
    %282 = vmatprep.subr.bf16.mxu0 0
    %283 = vmatpush1.bf16.msra.mxu0 0
    %284 = vmatprep.mubr.bf16.mxu0 0
    %285 = vmatmul.mubr.bf16.gmra.mrb[0].mxu0 %v250
    %v286 = vpop.f32.mrb[0].mxu0
    %v287 = vadd.f32 %v229, %v286
    %v288 = vpop.f32.mrb[0].mxu0
    %v289 = vpop.f32.mrb[0].mxu0
    %v290 = vpop.f32.mrb[0].mxu0
    %291 = vdwg.mxu0
    %v292 = vadd.f32 %v287, %v91
    %v293 = vmul.f32 %v292, 0.5
    %v294 = vtanh.pop %v293
    %v295 = vadd.f32 %v294, 1.0
    %v296 = vmul.f32 %v295, 0.5
    %v297 = vtanh.pop %v292
    %v298 = vmul.f32 %v296, 0.0
    %300 = vrot.lane.b32.xlu0 %v297, 64
    %v301 = vpop.permute.xlu0 %300
    %v303 = vmul.f32 %v296, %v301
    %305 = vrot.lane.b32.xlu0 %v303, 32
    %v306 = vpop.permute.xlu0 %305
    %v308 = vadd.f32 %v298, %v306
    %v309 = vtanh.pop %v308
    %311 = vrot.lane.b32.xlu0 %v309, 64
    %v312 = vpop.permute.xlu0 %311
    %v314 = vmul.f32 %v296, %v312
    %315 = vmatprep.subr.bf16.mxu0 0
    %316 = vmatpush1.bf16.msra.mxu0 %v110
    %317 = vmatprep.subr.bf16.mxu0 0
    %318 = vmatpush1.bf16.msra.mxu0 %v111
    %319 = vmatprep.subr.bf16.mxu0 0
    %320 = vmatpush1.bf16.msra.mxu0 0
    %321 = vmatprep.subr.bf16.mxu0 0
    %322 = vmatpush1.bf16.msra.mxu0 0
    %323 = vmatprep.subr.bf16.mxu0 0
    %324 = vmatpush1.bf16.msra.mxu0 0
    %325 = vmatprep.subr.bf16.mxu0 0
    %326 = vmatpush1.bf16.msra.mxu0 0
    %327 = vmatprep.subr.bf16.mxu0 0
    %328 = vmatpush1.bf16.msra.mxu0 0
    %329 = vmatprep.subr.bf16.mxu0 0
    %330 = vmatpush1.bf16.msra.mxu0 0
    %331 = vmatprep.subr.bf16.mxu0 0
    %332 = vmatpush1.bf16.msra.mxu0 0
    %333 = vmatprep.subr.bf16.mxu0 0
    %334 = vmatpush1.bf16.msra.mxu0 0
    %335 = vmatprep.subr.bf16.mxu0 0
    %336 = vmatpush1.bf16.msra.mxu0 0
    %337 = vmatprep.subr.bf16.mxu0 0
    %338 = vmatpush1.bf16.msra.mxu0 0
    %339 = vmatprep.subr.bf16.mxu0 0
    %340 = vmatpush1.bf16.msra.mxu0 0
    %341 = vmatprep.subr.bf16.mxu0 0
    %342 = vmatpush1.bf16.msra.mxu0 0
    %343 = vmatprep.subr.bf16.mxu0 0
    %344 = vmatpush1.bf16.msra.mxu0 0
    %345 = vmatprep.subr.bf16.mxu0 0
    %346 = vmatpush1.bf16.msra.mxu0 0
    %347 = vmatprep.mubr.bf16.mxu0 0
    %348 = vmatmul.mubr.bf16.gmra.mrb[0].mxu0 %v250
    %v349 = vpop.f32.mrb[0].mxu0
    %v350 = vadd.f32 0.0, %v349
    %v351 = vpop.f32.mrb[0].mxu0
    %v352 = vpop.f32.mrb[0].mxu0
    %v353 = vpop.f32.mrb[0].mxu0
    %354 = vdwg.mxu0
    %v355 = vadd.f32 %v95, %v350
    %v356 = vmul.f32 %v355, 0.5
    %v357 = vtanh.pop %v356
    %v358 = vadd.f32 %v357, 1.0
    %v359 = vmul.f32 %v358, 0.5
    %v360 = vtanh.pop %v355
    %v361 = vmul.f32 %v359, %v174
    %363 = vrot.lane.b32.xlu0 %v360, 64
    %v364 = vpop.permute.xlu0 %363
    %v366 = vmul.f32 %v359, %v364
    %368 = vrot.lane.b32.xlu0 %v366, 32
    %v369 = vpop.permute.xlu0 %368
    %v371 = vadd.f32 %v361, %v369
    %v372 = vtanh.pop %v371
    %374 = vrot.lane.b32.xlu0 %v372, 64
    %v375 = vpop.permute.xlu0 %374
    %v377 = vmul.f32 %v359, %v375
    %v378 = vpack.c.bf16 %v377, %v377
    %v379 = vpack.c.bf16 %v314, %v314
    %381 = vrot.lane.b32.xlu0 %v379, 32
    %v382 = vpop.permute.xlu0 %381
    %v384 = vsel %vm114, %v382, 0
    %386 = vmatprep.subr.bf16.mxu0 0
    %387 = vmatpush1.bf16.msra.mxu0 %v190
    %388 = vmatprep.subr.bf16.mxu0 0
    %389 = vmatpush1.bf16.msra.mxu0 %v191
    %390 = vmatprep.subr.bf16.mxu0 0
    %391 = vmatpush1.bf16.msra.mxu0 0
    %392 = vmatprep.subr.bf16.mxu0 0
    %393 = vmatpush1.bf16.msra.mxu0 0
    %394 = vmatprep.subr.bf16.mxu0 0
    %395 = vmatpush1.bf16.msra.mxu0 0
    %396 = vmatprep.subr.bf16.mxu0 0
    %397 = vmatpush1.bf16.msra.mxu0 0
    %398 = vmatprep.subr.bf16.mxu0 0
    %399 = vmatpush1.bf16.msra.mxu0 0
    %400 = vmatprep.subr.bf16.mxu0 0
    %401 = vmatpush1.bf16.msra.mxu0 0
    %402 = vmatprep.subr.bf16.mxu0 0
    %403 = vmatpush1.bf16.msra.mxu0 0
    %404 = vmatprep.subr.bf16.mxu0 0
    %405 = vmatpush1.bf16.msra.mxu0 0
    %406 = vmatprep.subr.bf16.mxu0 0
    %407 = vmatpush1.bf16.msra.mxu0 0
    %408 = vmatprep.subr.bf16.mxu0 0
    %409 = vmatpush1.bf16.msra.mxu0 0
    %410 = vmatprep.subr.bf16.mxu0 0
    %411 = vmatpush1.bf16.msra.mxu0 0
    %412 = vmatprep.subr.bf16.mxu0 0
    %413 = vmatpush1.bf16.msra.mxu0 0
    %414 = vmatprep.subr.bf16.mxu0 0
    %415 = vmatpush1.bf16.msra.mxu0 0
    %416 = vmatprep.subr.bf16.mxu0 0
    %417 = vmatpush1.bf16.msra.mxu0 0
    %418 = vmatprep.mubr.bf16.mxu0 0
    %419 = vmatmul.mubr.bf16.gmra.mrb[0].mxu0 %v384
    %v420 = vpop.f32.mrb[0].mxu0
    %v421 = vadd.f32 0.0, %v420
    %v422 = vpop.f32.mrb[0].mxu0
    %v423 = vpop.f32.mrb[0].mxu0
    %v424 = vpop.f32.mrb[0].mxu0
    %425 = vdwg.mxu0
    %427 = vrot.lane.b32.xlu0 %v378, 32
    %v428 = vpop.permute.xlu0 %427
    %v430 = vsel %vm114, %v428, 0
    %432 = vmatprep.subr.bf16.mxu0 0
    %433 = vmatpush1.bf16.msra.mxu0 %v245
    %434 = vmatprep.subr.bf16.mxu0 0
    %435 = vmatpush1.bf16.msra.mxu0 %v246
    %436 = vmatprep.subr.bf16.mxu0 0
    %437 = vmatpush1.bf16.msra.mxu0 0
    %438 = vmatprep.subr.bf16.mxu0 0
    %439 = vmatpush1.bf16.msra.mxu0 0
    %440 = vmatprep.subr.bf16.mxu0 0
    %441 = vmatpush1.bf16.msra.mxu0 0
    %442 = vmatprep.subr.bf16.mxu0 0
    %443 = vmatpush1.bf16.msra.mxu0 0
    %444 = vmatprep.subr.bf16.mxu0 0
    %445 = vmatpush1.bf16.msra.mxu0 0
    %446 = vmatprep.subr.bf16.mxu0 0
    %447 = vmatpush1.bf16.msra.mxu0 0
    %448 = vmatprep.subr.bf16.mxu0 0
    %449 = vmatpush1.bf16.msra.mxu0 0
    %450 = vmatprep.subr.bf16.mxu0 0
    %451 = vmatpush1.bf16.msra.mxu0 0
    %452 = vmatprep.subr.bf16.mxu0 0
    %453 = vmatpush1.bf16.msra.mxu0 0
    %454 = vmatprep.subr.bf16.mxu0 0
    %455 = vmatpush1.bf16.msra.mxu0 0
    %456 = vmatprep.subr.bf16.mxu0 0
    %457 = vmatpush1.bf16.msra.mxu0 0
    %458 = vmatprep.subr.bf16.mxu0 0
    %459 = vmatpush1.bf16.msra.mxu0 0
    %460 = vmatprep.subr.bf16.mxu0 0
    %461 = vmatpush1.bf16.msra.mxu0 0
    %462 = vmatprep.subr.bf16.mxu0 0
    %463 = vmatpush1.bf16.msra.mxu0 0
    %464 = vmatprep.mubr.bf16.mxu0 0
    %465 = vmatmul.mubr.bf16.gmra.mrb[0].mxu0 %v430
    %v466 = vpop.f32.mrb[0].mxu0
    %v467 = vadd.f32 %v421, %v466
    %v468 = vpop.f32.mrb[0].mxu0
    %v469 = vpop.f32.mrb[0].mxu0
    %v470 = vpop.f32.mrb[0].mxu0
    %471 = vdwg.mxu0
    %v472 = vadd.f32 %v467, %v91
    %v473 = vmul.f32 %v472, 0.5
    %v474 = vtanh.pop %v473
    %v475 = vadd.f32 %v474, 1.0
    %v476 = vmul.f32 %v475, 0.5
    %v477 = vtanh.pop %v472
    %v478 = vmul.f32 %v476, %v308
    %480 = vrot.lane.b32.xlu0 %v477, 64
    %v481 = vpop.permute.xlu0 %480
    %v483 = vmul.f32 %v476, %v481
    %485 = vrot.lane.b32.xlu0 %v483, 32
    %v486 = vpop.permute.xlu0 %485
    %v488 = vadd.f32 %v478, %v486
    %v489 = vtanh.pop %v488
    %491 = vrot.lane.b32.xlu0 %v489, 64
    %v492 = vpop.permute.xlu0 %491
    %v494 = vmul.f32 %v476, %v492
    %495 = vmatprep.subr.bf16.mxu0 0
    %496 = vmatpush1.bf16.msra.mxu0 %v110
    %497 = vmatprep.subr.bf16.mxu0 0
    %498 = vmatpush1.bf16.msra.mxu0 %v111
    %499 = vmatprep.subr.bf16.mxu0 0
    %500 = vmatpush1.bf16.msra.mxu0 0
    %501 = vmatprep.subr.bf16.mxu0 0
    %502 = vmatpush1.bf16.msra.mxu0 0
    %503 = vmatprep.subr.bf16.mxu0 0
    %504 = vmatpush1.bf16.msra.mxu0 0
    %505 = vmatprep.subr.bf16.mxu0 0
    %506 = vmatpush1.bf16.msra.mxu0 0
    %507 = vmatprep.subr.bf16.mxu0 0
    %508 = vmatpush1.bf16.msra.mxu0 0
    %509 = vmatprep.subr.bf16.mxu0 0
    %510 = vmatpush1.bf16.msra.mxu0 0
    %511 = vmatprep.subr.bf16.mxu0 0
    %512 = vmatpush1.bf16.msra.mxu0 0
    %513 = vmatprep.subr.bf16.mxu0 0
    %514 = vmatpush1.bf16.msra.mxu0 0
    %515 = vmatprep.subr.bf16.mxu0 0
    %516 = vmatpush1.bf16.msra.mxu0 0
    %517 = vmatprep.subr.bf16.mxu0 0
    %518 = vmatpush1.bf16.msra.mxu0 0
    %519 = vmatprep.subr.bf16.mxu0 0
    %520 = vmatpush1.bf16.msra.mxu0 0
    %521 = vmatprep.subr.bf16.mxu0 0
    %522 = vmatpush1.bf16.msra.mxu0 0
    %523 = vmatprep.subr.bf16.mxu0 0
    %524 = vmatpush1.bf16.msra.mxu0 0
    %525 = vmatprep.subr.bf16.mxu0 0
    %526 = vmatpush1.bf16.msra.mxu0 0
    %527 = vmatprep.mubr.bf16.mxu0 0
    %528 = vmatmul.mubr.bf16.gmra.mrb[0].mxu0 %v430
    %v529 = vpop.f32.mrb[0].mxu0
    %v530 = vadd.f32 0.0, %v529
    %v531 = vpop.f32.mrb[0].mxu0
    %v532 = vpop.f32.mrb[0].mxu0
    %v533 = vpop.f32.mrb[0].mxu0
    %534 = vdwg.mxu0
    %v535 = vadd.f32 %v96, %v530
    %v536 = vmul.f32 %v535, 0.5
    %v537 = vtanh.pop %v536
    %v538 = vadd.f32 %v537, 1.0
    %v539 = vmul.f32 %v538, 0.5
    %v540 = vtanh.pop %v535
    %v541 = vmul.f32 %v539, %v371
    %543 = vrot.lane.b32.xlu0 %v540, 64
    %v544 = vpop.permute.xlu0 %543
    %v546 = vmul.f32 %v539, %v544
    %548 = vrot.lane.b32.xlu0 %v546, 32
    %v549 = vpop.permute.xlu0 %548
    %v551 = vadd.f32 %v541, %v549
    %v552 = vtanh.pop %v551
    %554 = vrot.lane.b32.xlu0 %v552, 64
    %v555 = vpop.permute.xlu0 %554
    %v557 = vmul.f32 %v539, %v555
    %v558 = vpack.c.bf16 %v557, %v557
    %v559 = vpack.c.bf16 %v494, %v494
    %561 = vrot.lane.b32.xlu0 %v559, 32
    %v562 = vpop.permute.xlu0 %561
    %v564 = vsel %vm114, %v562, 0
    %566 = vmatprep.subr.bf16.mxu0 0
    %567 = vmatpush1.bf16.msra.mxu0 %v190
    %568 = vmatprep.subr.bf16.mxu0 0
    %569 = vmatpush1.bf16.msra.mxu0 %v191
    %570 = vmatprep.subr.bf16.mxu0 0
    %571 = vmatpush1.bf16.msra.mxu0 0
    %572 = vmatprep.subr.bf16.mxu0 0
    %573 = vmatpush1.bf16.msra.mxu0 0
    %574 = vmatprep.subr.bf16.mxu0 0
    %575 = vmatpush1.bf16.msra.mxu0 0
    %576 = vmatprep.subr.bf16.mxu0 0
    %577 = vmatpush1.bf16.msra.mxu0 0
    %578 = vmatprep.subr.bf16.mxu0 0
    %579 = vmatpush1.bf16.msra.mxu0 0
    %580 = vmatprep.subr.bf16.mxu0 0
    %581 = vmatpush1.bf16.msra.mxu0 0
    %582 = vmatprep.subr.bf16.mxu0 0
    %583 = vmatpush1.bf16.msra.mxu0 0
    %584 = vmatprep.subr.bf16.mxu0 0
    %585 = vmatpush1.bf16.msra.mxu0 0
    %586 = vmatprep.subr.bf16.mxu0 0
    %587 = vmatpush1.bf16.msra.mxu0 0
    %588 = vmatprep.subr.bf16.mxu0 0
    %589 = vmatpush1.bf16.msra.mxu0 0
    %590 = vmatprep.subr.bf16.mxu0 0
    %591 = vmatpush1.bf16.msra.mxu0 0
    %592 = vmatprep.subr.bf16.mxu0 0
    %593 = vmatpush1.bf16.msra.mxu0 0
    %594 = vmatprep.subr.bf16.mxu0 0
    %595 = vmatpush1.bf16.msra.mxu0 0
    %596 = vmatprep.subr.bf16.mxu0 0
    %597 = vmatpush1.bf16.msra.mxu0 0
    %598 = vmatprep.mubr.bf16.mxu0 0
    %599 = vmatmul.mubr.bf16.gmra.mrb[0].mxu0 %v564
    %v600 = vpop.f32.mrb[0].mxu0
    %v601 = vadd.f32 0.0, %v600
    %v602 = vpop.f32.mrb[0].mxu0
    %v603 = vpop.f32.mrb[0].mxu0
    %v604 = vpop.f32.mrb[0].mxu0
    %605 = vdwg.mxu0
    %607 = vrot.lane.b32.xlu0 %v558, 32
    %v608 = vpop.permute.xlu0 %607
    %v610 = vsel %vm114, %v608, 0
    %612 = vmatprep.subr.bf16.mxu0 0
    %613 = vmatpush1.bf16.msra.mxu0 %v245
    %614 = vmatprep.subr.bf16.mxu0 0
    %615 = vmatpush1.bf16.msra.mxu0 %v246
    %616 = vmatprep.subr.bf16.mxu0 0
    %617 = vmatpush1.bf16.msra.mxu0 0
    %618 = vmatprep.subr.bf16.mxu0 0
    %619 = vmatpush1.bf16.msra.mxu0 0
    %620 = vmatprep.subr.bf16.mxu0 0
    %621 = vmatpush1.bf16.msra.mxu0 0
    %622 = vmatprep.subr.bf16.mxu0 0
    %623 = vmatpush1.bf16.msra.mxu0 0
    %624 = vmatprep.subr.bf16.mxu0 0
    %625 = vmatpush1.bf16.msra.mxu0 0
    %626 = vmatprep.subr.bf16.mxu0 0
    %627 = vmatpush1.bf16.msra.mxu0 0
    %628 = vmatprep.subr.bf16.mxu0 0
    %629 = vmatpush1.bf16.msra.mxu0 0
    %630 = vmatprep.subr.bf16.mxu0 0
    %631 = vmatpush1.bf16.msra.mxu0 0
    %632 = vmatprep.subr.bf16.mxu0 0
    %633 = vmatpush1.bf16.msra.mxu0 0
    %634 = vmatprep.subr.bf16.mxu0 0
    %635 = vmatpush1.bf16.msra.mxu0 0
    %636 = vmatprep.subr.bf16.mxu0 0
    %637 = vmatpush1.bf16.msra.mxu0 0
    %638 = vmatprep.subr.bf16.mxu0 0
    %639 = vmatpush1.bf16.msra.mxu0 0
    %640 = vmatprep.subr.bf16.mxu0 0
    %641 = vmatpush1.bf16.msra.mxu0 0
    %642 = vmatprep.subr.bf16.mxu0 0
    %643 = vmatpush1.bf16.msra.mxu0 0
    %644 = vmatprep.mubr.bf16.mxu0 0
    %645 = vmatmul.mubr.bf16.gmra.mrb[0].mxu0 %v610
    %v646 = vpop.f32.mrb[0].mxu0
    %v647 = vadd.f32 %v601, %v646
    %v648 = vpop.f32.mrb[0].mxu0
    %v649 = vpop.f32.mrb[0].mxu0
    %v650 = vpop.f32.mrb[0].mxu0
    %651 = vdwg.mxu0
    %v652 = vadd.f32 %v647, %v91
    %v653 = vmul.f32 %v652, 0.5
    %v654 = vtanh.pop %v653
    %v655 = vadd.f32 %v654, 1.0
    %v656 = vmul.f32 %v655, 0.5
    %v657 = vtanh.pop %v652
    %v658 = vmul.f32 %v656, %v488
    %660 = vrot.lane.b32.xlu0 %v657, 64
    %v661 = vpop.permute.xlu0 %660
    %v663 = vmul.f32 %v656, %v661
    %665 = vrot.lane.b32.xlu0 %v663, 32
    %v666 = vpop.permute.xlu0 %665
    %v668 = vadd.f32 %v658, %v666
    %v669 = vtanh.pop %v668
    %671 = vrot.lane.b32.xlu0 %v669, 64
    %v672 = vpop.permute.xlu0 %671
    %v674 = vmul.f32 %v656, %v672
    %675 = vmatprep.subr.bf16.mxu0 0
    %676 = vmatpush1.bf16.msra.mxu0 %v110
    %677 = vmatprep.subr.bf16.mxu0 0
    %678 = vmatpush1.bf16.msra.mxu0 %v111
    %679 = vmatprep.subr.bf16.mxu0 0
    %680 = vmatpush1.bf16.msra.mxu0 0
    %681 = vmatprep.subr.bf16.mxu0 0
    %682 = vmatpush1.bf16.msra.mxu0 0
    %683 = vmatprep.subr.bf16.mxu0 0
    %684 = vmatpush1.bf16.msra.mxu0 0
    %685 = vmatprep.subr.bf16.mxu0 0
    %686 = vmatpush1.bf16.msra.mxu0 0
    %687 = vmatprep.subr.bf16.mxu0 0
    %688 = vmatpush1.bf16.msra.mxu0 0
    %689 = vmatprep.subr.bf16.mxu0 0
    %690 = vmatpush1.bf16.msra.mxu0 0
    %691 = vmatprep.subr.bf16.mxu0 0
    %692 = vmatpush1.bf16.msra.mxu0 0
    %693 = vmatprep.subr.bf16.mxu0 0
    %694 = vmatpush1.bf16.msra.mxu0 0
    %695 = vmatprep.subr.bf16.mxu0 0
    %696 = vmatpush1.bf16.msra.mxu0 0
    %697 = vmatprep.subr.bf16.mxu0 0
    %698 = vmatpush1.bf16.msra.mxu0 0
    %699 = vmatprep.subr.bf16.mxu0 0
    %700 = vmatpush1.bf16.msra.mxu0 0
    %701 = vmatprep.subr.bf16.mxu0 0
    %702 = vmatpush1.bf16.msra.mxu0 0
    %703 = vmatprep.subr.bf16.mxu0 0
    %704 = vmatpush1.bf16.msra.mxu0 0
    %705 = vmatprep.subr.bf16.mxu0 0
    %706 = vmatpush1.bf16.msra.mxu0 0
    %707 = vmatprep.mubr.bf16.mxu0 0
    %708 = vmatmul.mubr.bf16.gmra.mrb[0].mxu0 %v610
    %v709 = vpop.f32.mrb[0].mxu0
    %v710 = vadd.f32 0.0, %v709
    %v711 = vpop.f32.mrb[0].mxu0
    %v712 = vpop.f32.mrb[0].mxu0
    %v713 = vpop.f32.mrb[0].mxu0
    %714 = vdwg.mxu0
    %v715 = vadd.f32 %v97, %v710
    %v716 = vmul.f32 %v715, 0.5
    %v717 = vtanh.pop %v716
    %v718 = vadd.f32 %v717, 1.0
    %v719 = vmul.f32 %v718, 0.5
    %v720 = vtanh.pop %v715
    %v721 = vmul.f32 %v719, %v551
    %723 = vrot.lane.b32.xlu0 %v720, 64
    %v724 = vpop.permute.xlu0 %723
    %v726 = vmul.f32 %v719, %v724
    %728 = vrot.lane.b32.xlu0 %v726, 32
    %v729 = vpop.permute.xlu0 %728
    %v731 = vadd.f32 %v721, %v729
    %v732 = vtanh.pop %v731
    %734 = vrot.lane.b32.xlu0 %v732, 64
    %v735 = vpop.permute.xlu0 %734
    %v737 = vmul.f32 %v719, %v735
    %v738 = vpack.c.bf16 %v737, %v737
    %v739 = vpack.c.bf16 %v674, %v674
    %741 = vrot.lane.b32.xlu0 %v739, 32
    %v742 = vpop.permute.xlu0 %741
    %v744 = vsel %vm114, %v742, 0
    %746 = vmatprep.subr.bf16.mxu0 0
    %747 = vmatpush1.bf16.msra.mxu0 %v190
    %748 = vmatprep.subr.bf16.mxu0 0
    %749 = vmatpush1.bf16.msra.mxu0 %v191
    %750 = vmatprep.subr.bf16.mxu0 0
    %751 = vmatpush1.bf16.msra.mxu0 0
    %752 = vmatprep.subr.bf16.mxu0 0
    %753 = vmatpush1.bf16.msra.mxu0 0
    %754 = vmatprep.subr.bf16.mxu0 0
    %755 = vmatpush1.bf16.msra.mxu0 0
    %756 = vmatprep.subr.bf16.mxu0 0
    %757 = vmatpush1.bf16.msra.mxu0 0
    %758 = vmatprep.subr.bf16.mxu0 0
    %759 = vmatpush1.bf16.msra.mxu0 0
    %760 = vmatprep.subr.bf16.mxu0 0
    %761 = vmatpush1.bf16.msra.mxu0 0
    %762 = vmatprep.subr.bf16.mxu0 0
    %763 = vmatpush1.bf16.msra.mxu0 0
    %764 = vmatprep.subr.bf16.mxu0 0
    %765 = vmatpush1.bf16.msra.mxu0 0
    %766 = vmatprep.subr.bf16.mxu0 0
    %767 = vmatpush1.bf16.msra.mxu0 0
    %768 = vmatprep.subr.bf16.mxu0 0
    %769 = vmatpush1.bf16.msra.mxu0 0
    %770 = vmatprep.subr.bf16.mxu0 0
    %771 = vmatpush1.bf16.msra.mxu0 0
    %772 = vmatprep.subr.bf16.mxu0 0
    %773 = vmatpush1.bf16.msra.mxu0 0
    %774 = vmatprep.subr.bf16.mxu0 0
    %775 = vmatpush1.bf16.msra.mxu0 0
    %776 = vmatprep.subr.bf16.mxu0 0
    %777 = vmatpush1.bf16.msra.mxu0 0
    %778 = vmatprep.mubr.bf16.mxu0 0
    %779 = vmatmul.mubr.bf16.gmra.mrb[0].mxu0 %v744
    %v780 = vpop.f32.mrb[0].mxu0
    %v781 = vadd.f32 0.0, %v780
    %v782 = vpop.f32.mrb[0].mxu0
    %v783 = vpop.f32.mrb[0].mxu0
    %v784 = vpop.f32.mrb[0].mxu0
    %785 = vdwg.mxu0
    %787 = vrot.lane.b32.xlu0 %v738, 32
    %v788 = vpop.permute.xlu0 %787
    %v790 = vsel %vm114, %v788, 0
    %792 = vmatprep.subr.bf16.mxu0 0
    %793 = vmatpush1.bf16.msra.mxu0 %v245
    %794 = vmatprep.subr.bf16.mxu0 0
    %795 = vmatpush1.bf16.msra.mxu0 %v246
    %796 = vmatprep.subr.bf16.mxu0 0
    %797 = vmatpush1.bf16.msra.mxu0 0
    %798 = vmatprep.subr.bf16.mxu0 0
    %799 = vmatpush1.bf16.msra.mxu0 0
    %800 = vmatprep.subr.bf16.mxu0 0
    %801 = vmatpush1.bf16.msra.mxu0 0
    %802 = vmatprep.subr.bf16.mxu0 0
    %803 = vmatpush1.bf16.msra.mxu0 0
    %804 = vmatprep.subr.bf16.mxu0 0
    %805 = vmatpush1.bf16.msra.mxu0 0
    %806 = vmatprep.subr.bf16.mxu0 0
    %807 = vmatpush1.bf16.msra.mxu0 0
    %808 = vmatprep.subr.bf16.mxu0 0
    %809 = vmatpush1.bf16.msra.mxu0 0
    %810 = vmatprep.subr.bf16.mxu0 0
    %811 = vmatpush1.bf16.msra.mxu0 0
    %812 = vmatprep.subr.bf16.mxu0 0
    %813 = vmatpush1.bf16.msra.mxu0 0
    %814 = vmatprep.subr.bf16.mxu0 0
    %815 = vmatpush1.bf16.msra.mxu0 0
    %816 = vmatprep.subr.bf16.mxu0 0
    %817 = vmatpush1.bf16.msra.mxu0 0
    %818 = vmatprep.subr.bf16.mxu0 0
    %819 = vmatpush1.bf16.msra.mxu0 0
    %820 = vmatprep.subr.bf16.mxu0 0
    %821 = vmatpush1.bf16.msra.mxu0 0
    %822 = vmatprep.subr.bf16.mxu0 0
    %823 = vmatpush1.bf16.msra.mxu0 0
    %824 = vmatprep.mubr.bf16.mxu0 0
    %825 = vmatmul.mubr.bf16.gmra.mrb[0].mxu0 %v790
    %v826 = vpop.f32.mrb[0].mxu0
    %v827 = vadd.f32 %v781, %v826
    %v828 = vpop.f32.mrb[0].mxu0
    %v829 = vpop.f32.mrb[0].mxu0
    %v830 = vpop.f32.mrb[0].mxu0
    %831 = vdwg.mxu0
    %v832 = vadd.f32 %v827, %v91
    %v833 = vmul.f32 %v832, 0.5
    %v834 = vtanh.pop %v833
    %v835 = vadd.f32 %v834, 1.0
    %v836 = vmul.f32 %v835, 0.5
    %v837 = vtanh.pop %v832
    %v838 = vmul.f32 %v836, %v668
    %840 = vrot.lane.b32.xlu0 %v837, 64
    %v841 = vpop.permute.xlu0 %840
    %v843 = vmul.f32 %v836, %v841
    %845 = vrot.lane.b32.xlu0 %v843, 32
    %v846 = vpop.permute.xlu0 %845
    %v848 = vadd.f32 %v838, %v846
    %v849 = vtanh.pop %v848
    %851 = vrot.lane.b32.xlu0 %v849, 64
    %v852 = vpop.permute.xlu0 %851
    %v854 = vmul.f32 %v836, %v852
    %855 = vmatprep.subr.bf16.mxu0 0
    %856 = vmatpush1.bf16.msra.mxu0 %v110
    %857 = vmatprep.subr.bf16.mxu0 0
    %858 = vmatpush1.bf16.msra.mxu0 %v111
    %859 = vmatprep.subr.bf16.mxu0 0
    %860 = vmatpush1.bf16.msra.mxu0 0
    %861 = vmatprep.subr.bf16.mxu0 0
    %862 = vmatpush1.bf16.msra.mxu0 0
    %863 = vmatprep.subr.bf16.mxu0 0
    %864 = vmatpush1.bf16.msra.mxu0 0
    %865 = vmatprep.subr.bf16.mxu0 0
    %866 = vmatpush1.bf16.msra.mxu0 0
    %867 = vmatprep.subr.bf16.mxu0 0
    %868 = vmatpush1.bf16.msra.mxu0 0
    %869 = vmatprep.subr.bf16.mxu0 0
    %870 = vmatpush1.bf16.msra.mxu0 0
    %871 = vmatprep.subr.bf16.mxu0 0
    %872 = vmatpush1.bf16.msra.mxu0 0
    %873 = vmatprep.subr.bf16.mxu0 0
    %874 = vmatpush1.bf16.msra.mxu0 0
    %875 = vmatprep.subr.bf16.mxu0 0
    %876 = vmatpush1.bf16.msra.mxu0 0
    %877 = vmatprep.subr.bf16.mxu0 0
    %878 = vmatpush1.bf16.msra.mxu0 0
    %879 = vmatprep.subr.bf16.mxu0 0
    %880 = vmatpush1.bf16.msra.mxu0 0
    %881 = vmatprep.subr.bf16.mxu0 0
    %882 = vmatpush1.bf16.msra.mxu0 0
    %883 = vmatprep.subr.bf16.mxu0 0
    %884 = vmatpush1.bf16.msra.mxu0 0
    %885 = vmatprep.subr.bf16.mxu0 0
    %886 = vmatpush1.bf16.msra.mxu0 0
    %887 = vmatprep.mubr.bf16.mxu0 0
    %888 = vmatmul.mubr.bf16.gmra.mrb[0].mxu0 %v790
    %v889 = vpop.f32.mrb[0].mxu0
    %v890 = vadd.f32 0.0, %v889
    %v891 = vpop.f32.mrb[0].mxu0
    %v892 = vpop.f32.mrb[0].mxu0
    %v893 = vpop.f32.mrb[0].mxu0
    %894 = vdwg.mxu0
    %v895 = vadd.f32 %v98, %v890
    %v896 = vmul.f32 %v895, 0.5
    %v897 = vtanh.pop %v896
    %v898 = vadd.f32 %v897, 1.0
    %v899 = vmul.f32 %v898, 0.5
    %v900 = vtanh.pop %v895
    %v901 = vmul.f32 %v899, %v731
    %903 = vrot.lane.b32.xlu0 %v900, 64
    %v904 = vpop.permute.xlu0 %903
    %v906 = vmul.f32 %v899, %v904
    %908 = vrot.lane.b32.xlu0 %v906, 32
    %v909 = vpop.permute.xlu0 %908
    %v911 = vadd.f32 %v901, %v909
    %v912 = vtanh.pop %v911
    %914 = vrot.lane.b32.xlu0 %v912, 64
    %v915 = vpop.permute.xlu0 %914
    %v917 = vmul.f32 %v899, %v915
    %v918 = vpack.c.bf16 %v917, %v917
    %v919 = vpack.c.bf16 %v854, %v854
    %921 = vrot.lane.b32.xlu0 %v919, 32
    %v922 = vpop.permute.xlu0 %921
    %v924 = vsel %vm114, %v922, 0
    %926 = vmatprep.subr.bf16.mxu0 0
    %927 = vmatpush1.bf16.msra.mxu0 %v190
    %928 = vmatprep.subr.bf16.mxu0 0
    %929 = vmatpush1.bf16.msra.mxu0 %v191
    %930 = vmatprep.subr.bf16.mxu0 0
    %931 = vmatpush1.bf16.msra.mxu0 0
    %932 = vmatprep.subr.bf16.mxu0 0
    %933 = vmatpush1.bf16.msra.mxu0 0
    %934 = vmatprep.subr.bf16.mxu0 0
    %935 = vmatpush1.bf16.msra.mxu0 0
    %936 = vmatprep.subr.bf16.mxu0 0
    %937 = vmatpush1.bf16.msra.mxu0 0
    %938 = vmatprep.subr.bf16.mxu0 0
    %939 = vmatpush1.bf16.msra.mxu0 0
    %940 = vmatprep.subr.bf16.mxu0 0
    %941 = vmatpush1.bf16.msra.mxu0 0
    %942 = vmatprep.subr.bf16.mxu0 0
    %943 = vmatpush1.bf16.msra.mxu0 0
    %944 = vmatprep.subr.bf16.mxu0 0
    %945 = vmatpush1.bf16.msra.mxu0 0
    %946 = vmatprep.subr.bf16.mxu0 0
    %947 = vmatpush1.bf16.msra.mxu0 0
    %948 = vmatprep.subr.bf16.mxu0 0
    %949 = vmatpush1.bf16.msra.mxu0 0
    %950 = vmatprep.subr.bf16.mxu0 0
    %951 = vmatpush1.bf16.msra.mxu0 0
    %952 = vmatprep.subr.bf16.mxu0 0
    %953 = vmatpush1.bf16.msra.mxu0 0
    %954 = vmatprep.subr.bf16.mxu0 0
    %955 = vmatpush1.bf16.msra.mxu0 0
    %956 = vmatprep.subr.bf16.mxu0 0
    %957 = vmatpush1.bf16.msra.mxu0 0
    %958 = vmatprep.mubr.bf16.mxu0 0
    %959 = vmatmul.mubr.bf16.gmra.mrb[0].mxu0 %v924
    %v960 = vpop.f32.mrb[0].mxu0
    %v961 = vadd.f32 0.0, %v960
    %v962 = vpop.f32.mrb[0].mxu0
    %v963 = vpop.f32.mrb[0].mxu0
    %v964 = vpop.f32.mrb[0].mxu0
    %965 = vdwg.mxu0
    %967 = vrot.lane.b32.xlu0 %v918, 32
    %v968 = vpop.permute.xlu0 %967
    %v970 = vsel %vm114, %v968, 0
    %972 = vmatprep.subr.bf16.mxu0 0
    %973 = vmatpush1.bf16.msra.mxu0 %v245
    %974 = vmatprep.subr.bf16.mxu0 0
    %975 = vmatpush1.bf16.msra.mxu0 %v246
    %976 = vmatprep.subr.bf16.mxu0 0
    %977 = vmatpush1.bf16.msra.mxu0 0
    %978 = vmatprep.subr.bf16.mxu0 0
    %979 = vmatpush1.bf16.msra.mxu0 0
    %980 = vmatprep.subr.bf16.mxu0 0
    %981 = vmatpush1.bf16.msra.mxu0 0
    %982 = vmatprep.subr.bf16.mxu0 0
    %983 = vmatpush1.bf16.msra.mxu0 0
    %984 = vmatprep.subr.bf16.mxu0 0
    %985 = vmatpush1.bf16.msra.mxu0 0
    %986 = vmatprep.subr.bf16.mxu0 0
    %987 = vmatpush1.bf16.msra.mxu0 0
    %988 = vmatprep.subr.bf16.mxu0 0
    %989 = vmatpush1.bf16.msra.mxu0 0
    %990 = vmatprep.subr.bf16.mxu0 0
    %991 = vmatpush1.bf16.msra.mxu0 0
    %992 = vmatprep.subr.bf16.mxu0 0
    %993 = vmatpush1.bf16.msra.mxu0 0
    %994 = vmatprep.subr.bf16.mxu0 0
    %995 = vmatpush1.bf16.msra.mxu0 0
    %996 = vmatprep.subr.bf16.mxu0 0
    %997 = vmatpush1.bf16.msra.mxu0 0
    %998 = vmatprep.subr.bf16.mxu0 0
    %999 = vmatpush1.bf16.msra.mxu0 0
    %1000 = vmatprep.subr.bf16.mxu0 0
    %1001 = vmatpush1.bf16.msra.mxu0 0
    %1002 = vmatprep.subr.bf16.mxu0 0
    %1003 = vmatpush1.bf16.msra.mxu0 0
    %1004 = vmatprep.mubr.bf16.mxu0 0
    %1005 = vmatmul.mubr.bf16.gmra.mrb[0].mxu0 %v970
    %v1006 = vpop.f32.mrb[0].mxu0
    %v1007 = vadd.f32 %v961, %v1006
    %v1008 = vpop.f32.mrb[0].mxu0
    %v1009 = vpop.f32.mrb[0].mxu0
    %v1010 = vpop.f32.mrb[0].mxu0
    %1011 = vdwg.mxu0
    %v1012 = vadd.f32 %v1007, %v91
    %v1013 = vmul.f32 %v1012, 0.5
    %v1014 = vtanh.pop %v1013
    %v1015 = vadd.f32 %v1014, 1.0
    %v1016 = vmul.f32 %v1015, 0.5
    %v1017 = vtanh.pop %v1012
    %v1018 = vmul.f32 %v1016, %v848
    %1020 = vrot.lane.b32.xlu0 %v1017, 64
    %v1021 = vpop.permute.xlu0 %1020
    %v1023 = vmul.f32 %v1016, %v1021
    %1025 = vrot.lane.b32.xlu0 %v1023, 32
    %v1026 = vpop.permute.xlu0 %1025
    %v1028 = vadd.f32 %v1018, %v1026
    %v1029 = vtanh.pop %v1028
    %1031 = vrot.lane.b32.xlu0 %v1029, 64
    %v1032 = vpop.permute.xlu0 %1031
    %v1034 = vmul.f32 %v1016, %v1032
    %1035 = vmatprep.subr.bf16.mxu0 0
    %1036 = vmatpush1.bf16.msra.mxu0 %v110
    %1037 = vmatprep.subr.bf16.mxu0 0
    %1038 = vmatpush1.bf16.msra.mxu0 %v111
    %1039 = vmatprep.subr.bf16.mxu0 0
    %1040 = vmatpush1.bf16.msra.mxu0 0
    %1041 = vmatprep.subr.bf16.mxu0 0
    %1042 = vmatpush1.bf16.msra.mxu0 0
    %1043 = vmatprep.subr.bf16.mxu0 0
    %1044 = vmatpush1.bf16.msra.mxu0 0
    %1045 = vmatprep.subr.bf16.mxu0 0
    %1046 = vmatpush1.bf16.msra.mxu0 0
    %1047 = vmatprep.subr.bf16.mxu0 0
    %1048 = vmatpush1.bf16.msra.mxu0 0
    %1049 = vmatprep.subr.bf16.mxu0 0
    %1050 = vmatpush1.bf16.msra.mxu0 0
    %1051 = vmatprep.subr.bf16.mxu0 0
    %1052 = vmatpush1.bf16.msra.mxu0 0
    %1053 = vmatprep.subr.bf16.mxu0 0
    %1054 = vmatpush1.bf16.msra.mxu0 0
    %1055 = vmatprep.subr.bf16.mxu0 0
    %1056 = vmatpush1.bf16.msra.mxu0 0
    %1057 = vmatprep.subr.bf16.mxu0 0
    %1058 = vmatpush1.bf16.msra.mxu0 0
    %1059 = vmatprep.subr.bf16.mxu0 0
    %1060 = vmatpush1.bf16.msra.mxu0 0
    %1061 = vmatprep.subr.bf16.mxu0 0
    %1062 = vmatpush1.bf16.msra.mxu0 0
    %1063 = vmatprep.subr.bf16.mxu0 0
    %1064 = vmatpush1.bf16.msra.mxu0 0
    %1065 = vmatprep.subr.bf16.mxu0 0
    %1066 = vmatpush1.bf16.msra.mxu0 0
    %1067 = vmatprep.mubr.bf16.mxu0 0
    %1068 = vmatmul.mubr.bf16.gmra.mrb[0].mxu0 %v970
    %v1069 = vpop.f32.mrb[0].mxu0
    %v1070 = vadd.f32 0.0, %v1069
    %v1071 = vpop.f32.mrb[0].mxu0
    %v1072 = vpop.f32.mrb[0].mxu0
    %v1073 = vpop.f32.mrb[0].mxu0
    %1074 = vdwg.mxu0
    %v1075 = vadd.f32 %v99, %v1070
    %v1076 = vmul.f32 %v1075, 0.5
    %v1077 = vtanh.pop %v1076
    %v1078 = vadd.f32 %v1077, 1.0
    %v1079 = vmul.f32 %v1078, 0.5
    %v1080 = vtanh.pop %v1075
    %v1081 = vmul.f32 %v1079, %v911
    %1083 = vrot.lane.b32.xlu0 %v1080, 64
    %v1084 = vpop.permute.xlu0 %1083
    %v1086 = vmul.f32 %v1079, %v1084
    %1088 = vrot.lane.b32.xlu0 %v1086, 32
    %v1089 = vpop.permute.xlu0 %1088
    %v1091 = vadd.f32 %v1081, %v1089
    %v1092 = vtanh.pop %v1091
    %1094 = vrot.lane.b32.xlu0 %v1092, 64
    %v1095 = vpop.permute.xlu0 %1094
    %v1097 = vmul.f32 %v1079, %v1095
    %v1098 = vpack.c.bf16 %v1097, %v1097
    %v1099 = vpack.c.bf16 %v1034, %v1034
    %1101 = vrot.lane.b32.xlu0 %v1099, 32
    %v1102 = vpop.permute.xlu0 %1101
    %v1104 = vsel %vm114, %v1102, 0
    %1106 = vmatprep.subr.bf16.mxu0 0
    %1107 = vmatpush1.bf16.msra.mxu0 %v190
    %1108 = vmatprep.subr.bf16.mxu0 0
    %1109 = vmatpush1.bf16.msra.mxu0 %v191
    %1110 = vmatprep.subr.bf16.mxu0 0
    %1111 = vmatpush1.bf16.msra.mxu0 0
    %1112 = vmatprep.subr.bf16.mxu0 0
    %1113 = vmatpush1.bf16.msra.mxu0 0
    %1114 = vmatprep.subr.bf16.mxu0 0
    %1115 = vmatpush1.bf16.msra.mxu0 0
    %1116 = vmatprep.subr.bf16.mxu0 0
    %1117 = vmatpush1.bf16.msra.mxu0 0
    %1118 = vmatprep.subr.bf16.mxu0 0
    %1119 = vmatpush1.bf16.msra.mxu0 0
    %1120 = vmatprep.subr.bf16.mxu0 0
    %1121 = vmatpush1.bf16.msra.mxu0 0
    %1122 = vmatprep.subr.bf16.mxu0 0
    %1123 = vmatpush1.bf16.msra.mxu0 0
    %1124 = vmatprep.subr.bf16.mxu0 0
    %1125 = vmatpush1.bf16.msra.mxu0 0
    %1126 = vmatprep.subr.bf16.mxu0 0
    %1127 = vmatpush1.bf16.msra.mxu0 0
    %1128 = vmatprep.subr.bf16.mxu0 0
    %1129 = vmatpush1.bf16.msra.mxu0 0
    %1130 = vmatprep.subr.bf16.mxu0 0
    %1131 = vmatpush1.bf16.msra.mxu0 0
    %1132 = vmatprep.subr.bf16.mxu0 0
    %1133 = vmatpush1.bf16.msra.mxu0 0
    %1134 = vmatprep.subr.bf16.mxu0 0
    %1135 = vmatpush1.bf16.msra.mxu0 0
    %1136 = vmatprep.subr.bf16.mxu0 0
    %1137 = vmatpush1.bf16.msra.mxu0 0
    %1138 = vmatprep.mubr.bf16.mxu0 0
    %1139 = vmatmul.mubr.bf16.gmra.mrb[0].mxu0 %v1104
    %v1140 = vpop.f32.mrb[0].mxu0
    %v1141 = vadd.f32 0.0, %v1140
    %v1142 = vpop.f32.mrb[0].mxu0
    %v1143 = vpop.f32.mrb[0].mxu0
    %v1144 = vpop.f32.mrb[0].mxu0
    %1145 = vdwg.mxu0
    %1147 = vrot.lane.b32.xlu0 %v1098, 32
    %v1148 = vpop.permute.xlu0 %1147
    %v1150 = vsel %vm114, %v1148, 0
    %1152 = vmatprep.subr.bf16.mxu0 0
    %1153 = vmatpush1.bf16.msra.mxu0 %v245
    %1154 = vmatprep.subr.bf16.mxu0 0
    %1155 = vmatpush1.bf16.msra.mxu0 %v246
    %1156 = vmatprep.subr.bf16.mxu0 0
    %1157 = vmatpush1.bf16.msra.mxu0 0
    %1158 = vmatprep.subr.bf16.mxu0 0
    %1159 = vmatpush1.bf16.msra.mxu0 0
    %1160 = vmatprep.subr.bf16.mxu0 0
    %1161 = vmatpush1.bf16.msra.mxu0 0
    %1162 = vmatprep.subr.bf16.mxu0 0
    %1163 = vmatpush1.bf16.msra.mxu0 0
    %1164 = vmatprep.subr.bf16.mxu0 0
    %1165 = vmatpush1.bf16.msra.mxu0 0
    %1166 = vmatprep.subr.bf16.mxu0 0
    %1167 = vmatpush1.bf16.msra.mxu0 0
    %1168 = vmatprep.subr.bf16.mxu0 0
    %1169 = vmatpush1.bf16.msra.mxu0 0
    %1170 = vmatprep.subr.bf16.mxu0 0
    %1171 = vmatpush1.bf16.msra.mxu0 0
    %1172 = vmatprep.subr.bf16.mxu0 0
    %1173 = vmatpush1.bf16.msra.mxu0 0
    %1174 = vmatprep.subr.bf16.mxu0 0
    %1175 = vmatpush1.bf16.msra.mxu0 0
    %1176 = vmatprep.subr.bf16.mxu0 0
    %1177 = vmatpush1.bf16.msra.mxu0 0
    %1178 = vmatprep.subr.bf16.mxu0 0
    %1179 = vmatpush1.bf16.msra.mxu0 0
    %1180 = vmatprep.subr.bf16.mxu0 0
    %1181 = vmatpush1.bf16.msra.mxu0 0
    %1182 = vmatprep.subr.bf16.mxu0 0
    %1183 = vmatpush1.bf16.msra.mxu0 0
    %1184 = vmatprep.mubr.bf16.mxu0 0
    %1185 = vmatmul.mubr.bf16.gmra.mrb[0].mxu0 %v1150
    %v1186 = vpop.f32.mrb[0].mxu0
    %v1187 = vadd.f32 %v1141, %v1186
    %v1188 = vpop.f32.mrb[0].mxu0
    %v1189 = vpop.f32.mrb[0].mxu0
    %v1190 = vpop.f32.mrb[0].mxu0
    %1191 = vdwg.mxu0
    %v1192 = vadd.f32 %v1187, %v91
    %v1193 = vmul.f32 %v1192, 0.5
    %v1194 = vtanh.pop %v1193
    %v1195 = vadd.f32 %v1194, 1.0
    %v1196 = vmul.f32 %v1195, 0.5
    %v1197 = vtanh.pop %v1192
    %v1198 = vmul.f32 %v1196, %v1028
    %1200 = vrot.lane.b32.xlu0 %v1197, 64
    %v1201 = vpop.permute.xlu0 %1200
    %v1203 = vmul.f32 %v1196, %v1201
    %1205 = vrot.lane.b32.xlu0 %v1203, 32
    %v1206 = vpop.permute.xlu0 %1205
    %v1208 = vadd.f32 %v1198, %v1206
    %v1209 = vtanh.pop %v1208
    %1211 = vrot.lane.b32.xlu0 %v1209, 64
    %v1212 = vpop.permute.xlu0 %1211
    %v1214 = vmul.f32 %v1196, %v1212
    %1215 = vmatprep.subr.bf16.mxu0 0
    %1216 = vmatpush1.bf16.msra.mxu0 %v110
    %1217 = vmatprep.subr.bf16.mxu0 0
    %1218 = vmatpush1.bf16.msra.mxu0 %v111
    %1219 = vmatprep.subr.bf16.mxu0 0
    %1220 = vmatpush1.bf16.msra.mxu0 0
    %1221 = vmatprep.subr.bf16.mxu0 0
    %1222 = vmatpush1.bf16.msra.mxu0 0
    %1223 = vmatprep.subr.bf16.mxu0 0
    %1224 = vmatpush1.bf16.msra.mxu0 0
    %1225 = vmatprep.subr.bf16.mxu0 0
    %1226 = vmatpush1.bf16.msra.mxu0 0
    %1227 = vmatprep.subr.bf16.mxu0 0
    %1228 = vmatpush1.bf16.msra.mxu0 0
    %1229 = vmatprep.subr.bf16.mxu0 0
    %1230 = vmatpush1.bf16.msra.mxu0 0
    %1231 = vmatprep.subr.bf16.mxu0 0
    %1232 = vmatpush1.bf16.msra.mxu0 0
    %1233 = vmatprep.subr.bf16.mxu0 0
    %1234 = vmatpush1.bf16.msra.mxu0 0
    %1235 = vmatprep.subr.bf16.mxu0 0
    %1236 = vmatpush1.bf16.msra.mxu0 0
    %1237 = vmatprep.subr.bf16.mxu0 0
    %1238 = vmatpush1.bf16.msra.mxu0 0
    %1239 = vmatprep.subr.bf16.mxu0 0
    %1240 = vmatpush1.bf16.msra.mxu0 0
    %1241 = vmatprep.subr.bf16.mxu0 0
    %1242 = vmatpush1.bf16.msra.mxu0 0
    %1243 = vmatprep.subr.bf16.mxu0 0
    %1244 = vmatpush1.bf16.msra.mxu0 0
    %1245 = vmatprep.subr.bf16.mxu0 0
    %1246 = vmatpush1.bf16.msra.mxu0 0
    %1247 = vmatprep.mubr.bf16.mxu0 0
    %1248 = vmatmul.mubr.bf16.gmra.mrb[0].mxu0 %v1150
    %v1249 = vpop.f32.mrb[0].mxu0
    %v1250 = vadd.f32 0.0, %v1249
    %v1251 = vpop.f32.mrb[0].mxu0
    %v1252 = vpop.f32.mrb[0].mxu0
    %v1253 = vpop.f32.mrb[0].mxu0
    %1254 = vdwg.mxu0
    %v1255 = vadd.f32 %v100, %v1250
    %v1256 = vmul.f32 %v1255, 0.5
    %v1257 = vtanh.pop %v1256
    %v1258 = vadd.f32 %v1257, 1.0
    %v1259 = vmul.f32 %v1258, 0.5
    %v1260 = vtanh.pop %v1255
    %v1261 = vmul.f32 %v1259, %v1091
    %1263 = vrot.lane.b32.xlu0 %v1260, 64
    %v1264 = vpop.permute.xlu0 %1263
    %v1266 = vmul.f32 %v1259, %v1264
    %1268 = vrot.lane.b32.xlu0 %v1266, 32
    %v1269 = vpop.permute.xlu0 %1268
    %v1271 = vadd.f32 %v1261, %v1269
    %v1272 = vtanh.pop %v1271
    %1274 = vrot.lane.b32.xlu0 %v1272, 64
    %v1275 = vpop.permute.xlu0 %1274
    %v1277 = vmul.f32 %v1259, %v1275
    %v1278 = vpack.c.bf16 %v1277, %v1277
    %v1279 = vpack.c.bf16 %v1214, %v1214
    %1281 = vrot.lane.b32.xlu0 %v1279, 32
    %v1282 = vpop.permute.xlu0 %1281
    %v1284 = vsel %vm114, %v1282, 0
    %1286 = vmatprep.subr.bf16.mxu0 0
    %1287 = vmatpush1.bf16.msra.mxu0 %v190
    %1288 = vmatprep.subr.bf16.mxu0 0
    %1289 = vmatpush1.bf16.msra.mxu0 %v191
    %1290 = vmatprep.subr.bf16.mxu0 0
    %1291 = vmatpush1.bf16.msra.mxu0 0
    %1292 = vmatprep.subr.bf16.mxu0 0
    %1293 = vmatpush1.bf16.msra.mxu0 0
    %1294 = vmatprep.subr.bf16.mxu0 0
    %1295 = vmatpush1.bf16.msra.mxu0 0
    %1296 = vmatprep.subr.bf16.mxu0 0
    %1297 = vmatpush1.bf16.msra.mxu0 0
    %1298 = vmatprep.subr.bf16.mxu0 0
    %1299 = vmatpush1.bf16.msra.mxu0 0
    %1300 = vmatprep.subr.bf16.mxu0 0
    %1301 = vmatpush1.bf16.msra.mxu0 0
    %1302 = vmatprep.subr.bf16.mxu0 0
    %1303 = vmatpush1.bf16.msra.mxu0 0
    %1304 = vmatprep.subr.bf16.mxu0 0
    %1305 = vmatpush1.bf16.msra.mxu0 0
    %1306 = vmatprep.subr.bf16.mxu0 0
    %1307 = vmatpush1.bf16.msra.mxu0 0
    %1308 = vmatprep.subr.bf16.mxu0 0
    %1309 = vmatpush1.bf16.msra.mxu0 0
    %1310 = vmatprep.subr.bf16.mxu0 0
    %1311 = vmatpush1.bf16.msra.mxu0 0
    %1312 = vmatprep.subr.bf16.mxu0 0
    %1313 = vmatpush1.bf16.msra.mxu0 0
    %1314 = vmatprep.subr.bf16.mxu0 0
    %1315 = vmatpush1.bf16.msra.mxu0 0
    %1316 = vmatprep.subr.bf16.mxu0 0
    %1317 = vmatpush1.bf16.msra.mxu0 0
    %1318 = vmatprep.mubr.bf16.mxu0 0
    %1319 = vmatmul.mubr.bf16.gmra.mrb[0].mxu0 %v1284
    %v1320 = vpop.f32.mrb[0].mxu0
    %v1321 = vadd.f32 0.0, %v1320
    %v1322 = vpop.f32.mrb[0].mxu0
    %v1323 = vpop.f32.mrb[0].mxu0
    %v1324 = vpop.f32.mrb[0].mxu0
    %1325 = vdwg.mxu0
    %1327 = vrot.lane.b32.xlu0 %v1278, 32
    %v1328 = vpop.permute.xlu0 %1327
    %v1330 = vsel %vm114, %v1328, 0
    %1332 = vmatprep.subr.bf16.mxu0 0
    %1333 = vmatpush1.bf16.msra.mxu0 %v245
    %1334 = vmatprep.subr.bf16.mxu0 0
    %1335 = vmatpush1.bf16.msra.mxu0 %v246
    %1336 = vmatprep.subr.bf16.mxu0 0
    %1337 = vmatpush1.bf16.msra.mxu0 0
    %1338 = vmatprep.subr.bf16.mxu0 0
    %1339 = vmatpush1.bf16.msra.mxu0 0
    %1340 = vmatprep.subr.bf16.mxu0 0
    %1341 = vmatpush1.bf16.msra.mxu0 0
    %1342 = vmatprep.subr.bf16.mxu0 0
    %1343 = vmatpush1.bf16.msra.mxu0 0
    %1344 = vmatprep.subr.bf16.mxu0 0
    %1345 = vmatpush1.bf16.msra.mxu0 0
    %1346 = vmatprep.subr.bf16.mxu0 0
    %1347 = vmatpush1.bf16.msra.mxu0 0
    %1348 = vmatprep.subr.bf16.mxu0 0
    %1349 = vmatpush1.bf16.msra.mxu0 0
    %1350 = vmatprep.subr.bf16.mxu0 0
    %1351 = vmatpush1.bf16.msra.mxu0 0
    %1352 = vmatprep.subr.bf16.mxu0 0
    %1353 = vmatpush1.bf16.msra.mxu0 0
    %1354 = vmatprep.subr.bf16.mxu0 0
    %1355 = vmatpush1.bf16.msra.mxu0 0
    %1356 = vmatprep.subr.bf16.mxu0 0
    %1357 = vmatpush1.bf16.msra.mxu0 0
    %1358 = vmatprep.subr.bf16.mxu0 0
    %1359 = vmatpush1.bf16.msra.mxu0 0
    %1360 = vmatprep.subr.bf16.mxu0 0
    %1361 = vmatpush1.bf16.msra.mxu0 0
    %1362 = vmatprep.subr.bf16.mxu0 0
    %1363 = vmatpush1.bf16.msra.mxu0 0
    %1364 = vmatprep.mubr.bf16.mxu0 0
    %1365 = vmatmul.mubr.bf16.gmra.mrb[0].mxu0 %v1330
    %v1366 = vpop.f32.mrb[0].mxu0
    %v1367 = vadd.f32 %v1321, %v1366
    %v1368 = vpop.f32.mrb[0].mxu0
    %v1369 = vpop.f32.mrb[0].mxu0
    %v1370 = vpop.f32.mrb[0].mxu0
    %1371 = vdwg.mxu0
    %v1372 = vadd.f32 %v1367, %v91
    %v1373 = vmul.f32 %v1372, 0.5
    %v1374 = vtanh.pop %v1373
    %v1375 = vadd.f32 %v1374, 1.0
    %v1376 = vmul.f32 %v1375, 0.5
    %v1377 = vtanh.pop %v1372
    %v1378 = vmul.f32 %v1376, %v1208
    %1380 = vrot.lane.b32.xlu0 %v1377, 64
    %v1381 = vpop.permute.xlu0 %1380
    %v1383 = vmul.f32 %v1376, %v1381
    %1385 = vrot.lane.b32.xlu0 %v1383, 32
    %v1386 = vpop.permute.xlu0 %1385
    %v1388 = vadd.f32 %v1378, %v1386
    %v1389 = vtanh.pop %v1388
    %1391 = vrot.lane.b32.xlu0 %v1389, 64
    %v1392 = vpop.permute.xlu0 %1391
    %v1394 = vmul.f32 %v1376, %v1392
    %1395 = vmatprep.subr.bf16.mxu0 0
    %1396 = vmatpush1.bf16.msra.mxu0 %v110
    %1397 = vmatprep.subr.bf16.mxu0 0
    %1398 = vmatpush1.bf16.msra.mxu0 %v111
    %1399 = vmatprep.subr.bf16.mxu0 0
    %1400 = vmatpush1.bf16.msra.mxu0 0
    %1401 = vmatprep.subr.bf16.mxu0 0
    %1402 = vmatpush1.bf16.msra.mxu0 0
    %1403 = vmatprep.subr.bf16.mxu0 0
    %1404 = vmatpush1.bf16.msra.mxu0 0
    %1405 = vmatprep.subr.bf16.mxu0 0
    %1406 = vmatpush1.bf16.msra.mxu0 0
    %1407 = vmatprep.subr.bf16.mxu0 0
    %1408 = vmatpush1.bf16.msra.mxu0 0
    %1409 = vmatprep.subr.bf16.mxu0 0
    %1410 = vmatpush1.bf16.msra.mxu0 0
    %1411 = vmatprep.subr.bf16.mxu0 0
    %1412 = vmatpush1.bf16.msra.mxu0 0
    %1413 = vmatprep.subr.bf16.mxu0 0
    %1414 = vmatpush1.bf16.msra.mxu0 0
    %1415 = vmatprep.subr.bf16.mxu0 0
    %1416 = vmatpush1.bf16.msra.mxu0 0
    %1417 = vmatprep.subr.bf16.mxu0 0
    %1418 = vmatpush1.bf16.msra.mxu0 0
    %1419 = vmatprep.subr.bf16.mxu0 0
    %1420 = vmatpush1.bf16.msra.mxu0 0
    %1421 = vmatprep.subr.bf16.mxu0 0
    %1422 = vmatpush1.bf16.msra.mxu0 0
    %1423 = vmatprep.subr.bf16.mxu0 0
    %1424 = vmatpush1.bf16.msra.mxu0 0
    %1425 = vmatprep.subr.bf16.mxu0 0
    %1426 = vmatpush1.bf16.msra.mxu0 0
    %1427 = vmatprep.mubr.bf16.mxu0 0
    %1428 = vmatmul.mubr.bf16.gmra.mrb[0].mxu0 %v1330
    %v1429 = vpop.f32.mrb[0].mxu0
    %v1430 = vadd.f32 0.0, %v1429
    %v1431 = vpop.f32.mrb[0].mxu0
    %v1432 = vpop.f32.mrb[0].mxu0
    %v1433 = vpop.f32.mrb[0].mxu0
    %1434 = vdwg.mxu0
    %v1435 = vadd.f32 %v101, %v1430
    %v1436 = vmul.f32 %v1435, 0.5
    %v1437 = vtanh.pop %v1436
    %v1438 = vadd.f32 %v1437, 1.0
    %v1439 = vmul.f32 %v1438, 0.5
    %v1440 = vtanh.pop %v1435
    %v1441 = vmul.f32 %v1439, %v1271
    %1443 = vrot.lane.b32.xlu0 %v1440, 64
    %v1444 = vpop.permute.xlu0 %1443
    %v1446 = vmul.f32 %v1439, %v1444
    %1448 = vrot.lane.b32.xlu0 %v1446, 32
    %v1449 = vpop.permute.xlu0 %1448
    %v1451 = vadd.f32 %v1441, %v1449
    %v1452 = vtanh.pop %v1451
    %1454 = vrot.lane.b32.xlu0 %v1452, 64
    %v1455 = vpop.permute.xlu0 %1454
    %v1457 = vmul.f32 %v1439, %v1455
    %v1458 = vpack.c.bf16 %v1457, %v1457
    %v1459 = vpack.c.bf16 %v1394, %v1394
    %1461 = vrot.lane.b32.xlu0 %v1459, 32
    %v1462 = vpop.permute.xlu0 %1461
    %v1464 = vsel %vm114, %v1462, 0
    %1466 = vmatprep.subr.bf16.mxu0 0
    %1467 = vmatpush1.bf16.msra.mxu0 %v190
    %1468 = vmatprep.subr.bf16.mxu0 0
    %1469 = vmatpush1.bf16.msra.mxu0 %v191
    %1470 = vmatprep.subr.bf16.mxu0 0
    %1471 = vmatpush1.bf16.msra.mxu0 0
    %1472 = vmatprep.subr.bf16.mxu0 0
    %1473 = vmatpush1.bf16.msra.mxu0 0
    %1474 = vmatprep.subr.bf16.mxu0 0
    %1475 = vmatpush1.bf16.msra.mxu0 0
    %1476 = vmatprep.subr.bf16.mxu0 0
    %1477 = vmatpush1.bf16.msra.mxu0 0
    %1478 = vmatprep.subr.bf16.mxu0 0
    %1479 = vmatpush1.bf16.msra.mxu0 0
    %1480 = vmatprep.subr.bf16.mxu0 0
    %1481 = vmatpush1.bf16.msra.mxu0 0
    %1482 = vmatprep.subr.bf16.mxu0 0
    %1483 = vmatpush1.bf16.msra.mxu0 0
    %1484 = vmatprep.subr.bf16.mxu0 0
    %1485 = vmatpush1.bf16.msra.mxu0 0
    %1486 = vmatprep.subr.bf16.mxu0 0
    %1487 = vmatpush1.bf16.msra.mxu0 0
    %1488 = vmatprep.subr.bf16.mxu0 0
    %1489 = vmatpush1.bf16.msra.mxu0 0
    %1490 = vmatprep.subr.bf16.mxu0 0
    %1491 = vmatpush1.bf16.msra.mxu0 0
    %1492 = vmatprep.subr.bf16.mxu0 0
    %1493 = vmatpush1.bf16.msra.mxu0 0
    %1494 = vmatprep.subr.bf16.mxu0 0
    %1495 = vmatpush1.bf16.msra.mxu0 0
    %1496 = vmatprep.subr.bf16.mxu0 0
    %1497 = vmatpush1.bf16.msra.mxu0 0
    %1498 = vmatprep.mubr.bf16.mxu0 0
    %1499 = vmatmul.mubr.bf16.gmra.mrb[0].mxu0 %v1464
    %v1500 = vpop.f32.mrb[0].mxu0
    %v1501 = vadd.f32 0.0, %v1500
    %v1502 = vpop.f32.mrb[0].mxu0
    %v1503 = vpop.f32.mrb[0].mxu0
    %v1504 = vpop.f32.mrb[0].mxu0
    %1505 = vdwg.mxu0
    %1507 = vrot.lane.b32.xlu0 %v1458, 32
    %v1508 = vpop.permute.xlu0 %1507
    %v1510 = vsel %vm114, %v1508, 0
    %1512 = vmatprep.subr.bf16.mxu0 0
    %1513 = vmatpush1.bf16.msra.mxu0 %v245
    %1514 = vmatprep.subr.bf16.mxu0 0
    %1515 = vmatpush1.bf16.msra.mxu0 %v246
    %1516 = vmatprep.subr.bf16.mxu0 0
    %1517 = vmatpush1.bf16.msra.mxu0 0
    %1518 = vmatprep.subr.bf16.mxu0 0
    %1519 = vmatpush1.bf16.msra.mxu0 0
    %1520 = vmatprep.subr.bf16.mxu0 0
    %1521 = vmatpush1.bf16.msra.mxu0 0
    %1522 = vmatprep.subr.bf16.mxu0 0
    %1523 = vmatpush1.bf16.msra.mxu0 0
    %1524 = vmatprep.subr.bf16.mxu0 0
    %1525 = vmatpush1.bf16.msra.mxu0 0
    %1526 = vmatprep.subr.bf16.mxu0 0
    %1527 = vmatpush1.bf16.msra.mxu0 0
    %1528 = vmatprep.subr.bf16.mxu0 0
    %1529 = vmatpush1.bf16.msra.mxu0 0
    %1530 = vmatprep.subr.bf16.mxu0 0
    %1531 = vmatpush1.bf16.msra.mxu0 0
    %1532 = vmatprep.subr.bf16.mxu0 0
    %1533 = vmatpush1.bf16.msra.mxu0 0
    %1534 = vmatprep.subr.bf16.mxu0 0
    %1535 = vmatpush1.bf16.msra.mxu0 0
    %1536 = vmatprep.subr.bf16.mxu0 0
    %1537 = vmatpush1.bf16.msra.mxu0 0
    %1538 = vmatprep.subr.bf16.mxu0 0
    %1539 = vmatpush1.bf16.msra.mxu0 0
    %1540 = vmatprep.subr.bf16.mxu0 0
    %1541 = vmatpush1.bf16.msra.mxu0 0
    %1542 = vmatprep.subr.bf16.mxu0 0
    %1543 = vmatpush1.bf16.msra.mxu0 0
    %1544 = vmatprep.mubr.bf16.mxu0 0
    %1545 = vmatmul.mubr.bf16.gmra.mrb[0].mxu0 %v1510
    %v1546 = vpop.f32.mrb[0].mxu0
    %v1547 = vadd.f32 %v1501, %v1546
    %v1548 = vpop.f32.mrb[0].mxu0
    %v1549 = vpop.f32.mrb[0].mxu0
    %v1550 = vpop.f32.mrb[0].mxu0
    %1551 = vdwg.mxu0
    %v1552 = vadd.f32 %v1547, %v91
    %v1553 = vmul.f32 %v1552, 0.5
    %v1554 = vtanh.pop %v1553
    %v1555 = vadd.f32 %v1554, 1.0
    %v1556 = vmul.f32 %v1555, 0.5
    %v1557 = vtanh.pop %v1552
    %v1558 = vmul.f32 %v1556, %v1388
    %1560 = vrot.lane.b32.xlu0 %v1557, 64
    %v1561 = vpop.permute.xlu0 %1560
    %v1563 = vmul.f32 %v1556, %v1561
    %1565 = vrot.lane.b32.xlu0 %v1563, 32
    %v1566 = vpop.permute.xlu0 %1565
    %v1568 = vadd.f32 %v1558, %v1566
    %v1569 = vtanh.pop %v1568
    %1571 = vrot.lane.b32.xlu0 %v1569, 64
    %v1572 = vpop.permute.xlu0 %1571
    %v1574 = vmul.f32 %v1556, %v1572
    %v1575 = vpack.c.bf16 %v1574, %v1574
    %v1576 = vlaneseq
    %v1577 = vshrl.u32 %v1576, 7
    %v1578 = vsub.s32 0, %v1577
    %v1579 = vrot.slane %v92, %v1578
    %1581 = vrot.lane.b32.xlu0 %v1575, 32
    %v1582 = vpop.permute.xlu0 %1581
    %v1587 = vunpack.c.l.b16 %v67
    %v1588 = vunpack.c.l.b16 %v68
    %v1589 = vunpack.c.l.b16 %v69
    %v1590 = vunpack.c.l.b16 %v70
    %v1591 = vpack.c.b16 %v1588, %v1587
    %v1592 = vpack.c.b16 %v1590, %v1589
    %v1596 = vsel %vm114, %v1582, 0
    %1598 = vmatprep.subr.bf16.mxu0 0
    %1599 = vmatpush1.bf16.msra.mxu0 %v1591
    %1600 = vmatprep.subr.bf16.mxu0 0
    %1601 = vmatpush1.bf16.msra.mxu0 %v1592
    %1602 = vmatprep.subr.bf16.mxu0 0
    %1603 = vmatpush1.bf16.msra.mxu0 0
    %1604 = vmatprep.subr.bf16.mxu0 0
    %1605 = vmatpush1.bf16.msra.mxu0 0
    %1606 = vmatprep.subr.bf16.mxu0 0
    %1607 = vmatpush1.bf16.msra.mxu0 0
    %1608 = vmatprep.subr.bf16.mxu0 0
    %1609 = vmatpush1.bf16.msra.mxu0 0
    %1610 = vmatprep.subr.bf16.mxu0 0
    %1611 = vmatpush1.bf16.msra.mxu0 0
    %1612 = vmatprep.subr.bf16.mxu0 0
    %1613 = vmatpush1.bf16.msra.mxu0 0
    %1614 = vmatprep.subr.bf16.mxu0 0
    %1615 = vmatpush1.bf16.msra.mxu0 0
    %1616 = vmatprep.subr.bf16.mxu0 0
    %1617 = vmatpush1.bf16.msra.mxu0 0
    %1618 = vmatprep.subr.bf16.mxu0 0
    %1619 = vmatpush1.bf16.msra.mxu0 0
    %1620 = vmatprep.subr.bf16.mxu0 0
    %1621 = vmatpush1.bf16.msra.mxu0 0
    %1622 = vmatprep.subr.bf16.mxu0 0
    %1623 = vmatpush1.bf16.msra.mxu0 0
    %1624 = vmatprep.subr.bf16.mxu0 0
    %1625 = vmatpush1.bf16.msra.mxu0 0
    %1626 = vmatprep.subr.bf16.mxu0 0
    %1627 = vmatpush1.bf16.msra.mxu0 0
    %1628 = vmatprep.subr.bf16.mxu0 0
    %1629 = vmatpush1.bf16.msra.mxu0 0
    %1630 = vmatprep.mubr.bf16.mxu0 0
    %1631 = vmatmul.mubr.bf16.gmra.mrb[0].mxu0 %v1596
    %v1632 = vpop.f32.mrb[0].mxu0
    %v1633 = vadd.f32 %v1579, %v1632
    %v1634 = vpop.f32.mrb[0].mxu0
    %v1635 = vpop.f32.mrb[0].mxu0
    %v1636 = vpop.f32.mrb[0].mxu0
    %1637 = vdwg.mxu0
    %v1638 = vmax.f32 %v1633, 0.0
    %v1639 = vpack.c.bf16 %v1638, %v1638
    %v1640 = vlaneseq
    %v1641 = vshrl.u32 %v1640, 7
    %v1642 = vsub.s32 0, %v1641
    %v1643 = vrot.slane %v93, %v1642
    %v1660 = vunpack.c.l.b16 %v71
    %v1661 = vunpack.c.l.b16 %v72
    %v1662 = vunpack.c.l.b16 %v73
    %v1663 = vunpack.c.l.b16 %v74
    %v1664 = vunpack.c.l.b16 %v75
    %v1665 = vunpack.c.l.b16 %v76
    %v1666 = vunpack.c.l.b16 %v77
    %v1667 = vunpack.c.l.b16 %v78
    %v1668 = vunpack.c.l.b16 %v79
    %v1669 = vunpack.c.l.b16 %v80
    %v1670 = vunpack.c.l.b16 %v81
    %v1671 = vunpack.c.l.b16 %v82
    %v1672 = vunpack.c.l.b16 %v83
    %v1673 = vunpack.c.l.b16 %v84
    %v1674 = vunpack.c.l.b16 %v85
    %v1675 = vunpack.c.l.b16 %v86
    %v1676 = vpack.c.b16 %v1661, %v1660
    %v1677 = vpack.c.b16 %v1663, %v1662
    %v1678 = vpack.c.b16 %v1665, %v1664
    %v1679 = vpack.c.b16 %v1667, %v1666
    %v1680 = vpack.c.b16 %v1669, %v1668
    %v1681 = vpack.c.b16 %v1671, %v1670
    %v1682 = vpack.c.b16 %v1673, %v1672
    %v1683 = vpack.c.b16 %v1675, %v1674
    %1692 = vmatprep.subr.bf16.mxu0 0
    %1693 = vmatpush1.bf16.msra.mxu0 %v1676
    %1694 = vmatprep.subr.bf16.mxu0 0
    %1695 = vmatpush1.bf16.msra.mxu0 %v1677
    %1696 = vmatprep.subr.bf16.mxu0 0
    %1697 = vmatpush1.bf16.msra.mxu0 %v1678
    %1698 = vmatprep.subr.bf16.mxu0 0
    %1699 = vmatpush1.bf16.msra.mxu0 %v1679
    %1700 = vmatprep.subr.bf16.mxu0 0
    %1701 = vmatpush1.bf16.msra.mxu0 %v1680
    %1702 = vmatprep.subr.bf16.mxu0 0
    %1703 = vmatpush1.bf16.msra.mxu0 %v1681
    %1704 = vmatprep.subr.bf16.mxu0 0
    %1705 = vmatpush1.bf16.msra.mxu0 %v1682
    %1706 = vmatprep.subr.bf16.mxu0 0
    %1707 = vmatpush1.bf16.msra.mxu0 %v1683
    %1708 = vmatprep.subr.bf16.mxu0 0
    %1709 = vmatpush1.bf16.msra.mxu0 0
    %1710 = vmatprep.subr.bf16.mxu0 0
    %1711 = vmatpush1.bf16.msra.mxu0 0
    %1712 = vmatprep.subr.bf16.mxu0 0
    %1713 = vmatpush1.bf16.msra.mxu0 0
    %1714 = vmatprep.subr.bf16.mxu0 0
    %1715 = vmatpush1.bf16.msra.mxu0 0
    %1716 = vmatprep.subr.bf16.mxu0 0
    %1717 = vmatpush1.bf16.msra.mxu0 0
    %1718 = vmatprep.subr.bf16.mxu0 0
    %1719 = vmatpush1.bf16.msra.mxu0 0
    %1720 = vmatprep.subr.bf16.mxu0 0
    %1721 = vmatpush1.bf16.msra.mxu0 0
    %1722 = vmatprep.subr.bf16.mxu0 0
    %1723 = vmatpush1.bf16.msra.mxu0 0
    %1724 = vmatprep.mubr.bf16.mxu0 0
    %1725 = vmatmul.mubr.bf16.gmra.mrb[0].mxu0 %v1639
    %v1726 = vpop.f32.mrb[0].mxu0
    %v1727 = vadd.f32 %v1643, %v1726
    %v1728 = vpop.f32.mrb[0].mxu0
    %v1729 = vpop.f32.mrb[0].mxu0
    %v1730 = vpop.f32.mrb[0].mxu0
    %1731 = vdwg.mxu0
    %1732 = vst [vmem:[#allocation8] sm:$0xff] %v1727
    // Predicated region
    $region26: #{tpu_custom_call.1} parent=1 // pred_check
      _
    $region27: #{tpu_custom_call.1} parent=1 // pred_check_branch
      %1734 = sbr.rel (0) target = $region29
    $region28: #{tpu_custom_call.1} parent=1 // pred_region
      %s1736 = ssub.s32 128, 128
      %1737 = vsyncadd [#allocation4], %s1736
      %s1739 = sshll.u32 [#allocation8], 4
      %s1740 = int_to_ptr.vmem [resolvable:$true] %s1739
      %1742 = dma.vmem_to_hbm [thread:$0]  %s1740, 128, %s3, [#allocation4]
    $region29: #{tpu_custom_call.1} parent=1 // pred_fallthru
      _
    // Predicated region
    $region30: #{tpu_custom_call.1} parent=1 // pred_check
      _
    $region31: #{tpu_custom_call.1} parent=1 // pred_check_branch
      %1744 = sbr.rel (0) target = $region33
    $region32: #{tpu_custom_call.1} parent=1 // pred_region
      %1745 = dma.done [#allocation4], 128
    $region33: #{tpu_custom_call.1} parent=1 // pred_fallthru
      _
    %1746 = vsyncpa [#allocation3], 1
    %1747 = vsyncpa [#allocation6], 1
    %1748 = vsyncpa [#allocation4], 1

</llo_original>
